<compile_context>
chip_gen: v6e
topology: v6e:2x2x1
jax: 0.10.0
libtpu: 0.0.40
codegen_flags: <defaults>
</compile_context>

<pallas_src>
import functools

import jax
import jax.numpy as jnp
from jax.experimental import pallas as pl
from jax.experimental.pallas import tpu as pltpu


def _round_up(x, m):
    return ((x + m - 1) // m) * m


# ----------------------------- Fused Pallas kernel --------------------------

def _unitraj_fused_kernel(pf_ref, ff_ref, y_ref, eq_ref, ek_ref,
                          pw_ref, pb_ref, fw_ref, fb_ref,
                          qwx_ref, qwy_ref, qb_ref,
                          zw_ref, zb_ref,
                          dwf_ref, dwz_ref, dwzk_ref, db_ref,
                          o_ref, *, zd, k, tm, m_valid):
    f32 = jnp.float32
    bf16 = jnp.bfloat16

    def mm(a, w):
        # bf16 operands feed the MXU; accumulate in f32 (astype is a no-op for
        # operands already pre-cast to bf16 in the wrapper).
        return jnp.dot(a.astype(bf16), w.astype(bf16), preferred_element_type=f32)

    # ---- in-kernel row-validity mask (padded rows -> 0); no HBM stream ------
    row_ids = pl.program_id(0) * tm + jax.lax.broadcasted_iota(jnp.int32, (tm, 1), 0)
    rm = (row_ids < m_valid).astype(f32)                     # (TM, 1)

    y = y_ref[...]                                           # (TM, 2) targets, f32
    dwz = dwz_ref[...]                                       # (zd, 2) decoder z-half

    # ---- stand-in encoders: pointwise linear projections (MXU) --------------
    x_feat = mm(pf_ref[...], pw_ref[...]) + pb_ref[...]      # (TM, md)
    y_feat = mm(ff_ref[...], fw_ref[...]) + fb_ref[...]      # (TM, md)

    # ---- qz / pz heads (qz weight pre-split by input, so no in-kernel concat)
    qz_param = mm(x_feat, qwx_ref[...]) + mm(y_feat, qwy_ref[...]) + qb_ref[...]
    qz_mu, qz_logvar = qz_param[:, :zd], qz_param[:, zd:]
    qz_std = jnp.exp(0.5 * qz_logvar)

    pz_param = mm(x_feat, zw_ref[...]) + zb_ref[...]
    pz_mu, pz_logvar = pz_param[:, :zd], pz_param[:, zd:]
    pz_std = jnp.exp(0.5 * pz_logvar)

    # ---- KLD in logvar form (2*log(std) == logvar; skips exp->log round trip)
    kld = 0.5 * (pz_logvar - qz_logvar
                 + (qz_std * qz_std + (qz_mu - pz_mu) ** 2) / (pz_std * pz_std)
                 - 1.0)
    kld_s = jnp.sum(kld * rm)

    # ---- reconstruction path -------------------------------------------------
    qz_sample = qz_mu + qz_std * eq_ref[...].astype(f32)     # (TM, zd)
    base = mm(x_feat, dwf_ref[...]) + db_ref[...]            # decoder feature half
    y_hat = base + mm(qz_sample, dwz)                        # (TM, 2)
    d = (y_hat - y) * rm
    recon_s = jnp.sum(d * d)

    # ---- diverse path: shared parts once; all k z-parts in ONE blockdiag matmul
    a = base + mm(pz_mu, dwz) - y                            # (TM, 2) shared term
    pz_std_k = jnp.concatenate([pz_std] * k, axis=1)         # (TM, k*zd)
    e_all = pz_std_k * ek_ref[...].astype(f32)               # scaled noise
    b_all = mm(e_all, dwzk_ref[...])                         # (TM, 2k)
    dj = (jnp.concatenate([a] * k, axis=1) + b_all) * rm     # (TM, 2k)
    div_s = jnp.sum(dj * dj)

    # ---- one lane-dense (8,128) partial-sum tile (unmasked full-vreg store) --
    rows8 = jax.lax.broadcasted_iota(jnp.int32, (8, 128), 0)
    lanes = jax.lax.broadcasted_iota(jnp.int32, (8, 128), 1)
    tile = jnp.where((rows8 == 0) & (lanes == 0), kld_s,
           jnp.where((rows8 == 0) & (lanes == 1), recon_s,
           jnp.where((rows8 == 0) & (lanes == 2), div_s, 0.0)))
    o_ref[...] = tile


def fused_unitraj_losses(pf, ff, y2, eq, ek, weights, *, zd, k, row_tile=1024):
    """Returns (kld_sum, recon_sum, diverse_sum) over the M valid rows."""
    M = pf.shape[0]
    m16 = _round_up(M, 16)                        # bf16 sublane packing = 16
    row_tile = _round_up(row_tile, 16)
    tm = m16 if m16 <= row_tile else row_tile     # whole problem in one block when small
    m_pad = _round_up(M, tm)

    def pad_rows(a):
        if a.shape[0] == m_pad:
            return a
        return jnp.pad(a, ((0, m_pad - a.shape[0]), (0, 0)))

    per_row = tuple(pad_rows(a) for a in (pf, ff, y2, eq, ek))
    grid = (m_pad // tm,)

    in_specs = (
        [pl.BlockSpec((tm, a.shape[1]), lambda i: (i, 0)) for a in per_row]
        + [pl.BlockSpec(w.shape, lambda i: (0, 0)) for w in weights]
    )

    out = pl.pallas_call(
        functools.partial(_unitraj_fused_kernel, zd=zd, k=k, tm=tm, m_valid=M),
        out_shape=jax.ShapeDtypeStruct((grid[0] * 8, 128), jnp.float32),
        grid=grid,
        in_specs=in_specs,
        out_specs=pl.BlockSpec((8, 128), lambda i: (i, 0)),
        compiler_params=pltpu.CompilerParams(
            dimension_semantics=("parallel",),     # row blocks are independent
            vmem_limit_bytes=32 * 1024 * 1024),    # safe on v5e/v6e/v7x
    )(*per_row, *weights)

    partials = out.reshape(grid[0], 8, 128)[:, 0, :3].sum(axis=0)
    return partials[0], partials[1], partials[2]


# ----------------------------- Model config ---------------------------------

class Args:
    model_dim = 32
    z_dim = 8
    delta_dim = 4
    k = 5
    learn_prior = True
    input_dim = 8   # 2(xy) + 2(vel) + 1(mask) + 3(category)


def init_params(key, args):
    ks = jax.random.split(key, 5)
    md, zd, dd = args.model_dim, args.z_dim, args.delta_dim
    d_past = args.input_dim + 1 + 2 * dd   # x + mask + d_forw + d_back
    d_fut = args.input_dim + 1             # y_in + y_mask
    d_dec = md + zd
    return {
        # stand-in encoder / decoder projections (deterministic init)
        "past_w": jax.random.normal(ks[0], (d_past, md), jnp.float32) * 0.02,
        "past_b": jnp.zeros((md,), jnp.float32),
        "fut_w": jax.random.normal(ks[1], (d_fut, md), jnp.float32) * 0.02,
        "fut_b": jnp.zeros((md,), jnp.float32),
        "dec_w": jax.random.normal(ks[2], (d_dec, 2), jnp.float32) * 0.02,
        "dec_b": jnp.zeros((2,), jnp.float32),
        # qz / pz layers: nn.init.normal_(std=0.01), bias 0 (as in __init__)
        "qz_w": jax.random.normal(ks[3], (2 * md, 2 * zd), jnp.float32) * 0.01,
        "qz_b": jnp.zeros((2 * zd,), jnp.float32),
        "pz_w": jax.random.normal(ks[4], (md, 2 * zd), jnp.float32) * 0.01,
        "pz_b": jnp.zeros((2 * zd,), jnp.float32),
    }


# ----------------------------- Module glue (preprocessing) ------------------

def get_delta(m, delta_dim):
    """m: [B, T, N] -> [d_forw, d_back], each [B, T, N, delta_dim]."""
    B, T, N = m.shape
    m_flip = jnp.flip(m, axis=1)

    def recur(m_seq):
        def step(carry, m_t):
            d = 1.0 + (1.0 - m_t) * carry
            return d, d
        init = jnp.zeros((B, N), m_seq.dtype)
        _, ds = jax.lax.scan(step, init, jnp.moveaxis(m_seq[:, 1:, :], 1, 0))
        return jnp.concatenate([init[:, None, :], jnp.moveaxis(ds, 0, 1)], axis=1)

    d_forw = jnp.repeat(recur(m)[..., None], delta_dim, axis=-1)
    d_back = jnp.repeat(recur(m_flip)[..., None], delta_dim, axis=-1)
    return [d_forw, d_back]


def set_input(x, m=None):
    if m is not None:
        x_m = x * m
        vel = jnp.zeros_like(x).at[:, 1:].set(x_m[:, 1:] - x_m[:, :-1])
        vel_m = vel * m
        return jnp.concatenate([x_m, vel_m, m[..., 0:1]], axis=-1)
    vel = jnp.zeros_like(x).at[:, 1:].set(x[:, 1:] - x[:, :-1])
    ones = jnp.ones_like(x)
    return jnp.concatenate([x, vel, ones[..., 0:1]], axis=-1)


def add_category(x):
    B, T, N, _ = x.shape
    N_team = (N - 1) // 2
    cat = jnp.zeros((N, 3), x.dtype)
    cat = cat.at[0, 0].set(1.0)
    cat = cat.at[1:1 + N_team, 1].set(1.0)
    cat = cat.at[1 + N_team:N, 2].set(1.0)
    cat = jnp.broadcast_to(cat, (B, T, N, 3))
    return jnp.concatenate([x, cat], axis=-1)


# ----------------------------- Forward --------------------------------------

# TODO(synk): Past_Encoder / Future_Encoder / Decoder definitions are not in the
# provided snippet; they are stood in with single per-position linear projections
# (fused into the Pallas kernel) that preserve the module's shape contracts.
def unitraj_forward(params, data, mask, args, key):
    """data, mask: [B, T, N, 2] -> (kld_loss, recon_loss, diverse_loss)."""
    B, T, N, _ = data.shape
    M = B * T * N
    md, zd, k = args.model_dim, args.z_dim, args.k
    y = data

    # preprocessing (cheap elementwise / T-scan; stays in XLA)
    x_delta = get_delta(mask[..., 0], args.delta_dim)
    x = add_category(set_input(data, mask))
    assert x.shape[-1] == args.input_dim
    past_feats = jnp.concatenate([x, mask[..., 0:1], x_delta[0], x_delta[1]], axis=-1)

    y_in = add_category(set_input(y))
    assert y_in.shape[-1] == args.input_dim
    fut_feats = jnp.concatenate([y_in, jnp.ones((B, T, N, 1), jnp.float32)], axis=-1)

    key, k_q, k_p = jax.random.split(key, 3)
    eps_q = jax.random.normal(k_q, (B, T, N, zd), jnp.float32)
    eps_k = jax.random.normal(k_p, (B, T, N, k, zd), jnp.float32)

    # Flattened (rows, features) slabs. The stand-in encoders/decoder are
    # pointwise per (b,t,n), so the reference's reshape/permute round trips are
    # value-identity here and are dropped (no wrapper-side transposes).
    # MXU-feeding streams go to bf16 (halves HBM traffic); targets stay f32.
    bf16 = jnp.bfloat16
    pf = past_feats.reshape(M, -1).astype(bf16)
    ff = fut_feats.reshape(M, -1).astype(bf16)
    y2 = y.reshape(M, 2)
    eq = eps_q.reshape(M, zd).astype(bf16)
    ek = eps_k.reshape(M, k * zd).astype(bf16)

    if args.learn_prior:
        pz_w = params["pz_w"]
        pz_b = params["pz_b"].reshape(1, -1)
    else:
        # zero weights -> pz_mu = 0, pz_logvar = 0 (standard-normal prior)
        pz_w = jnp.zeros((md, 2 * zd), jnp.float32)
        pz_b = jnp.zeros((1, 2 * zd), jnp.float32)

    dwz = params["dec_w"][md:]                                     # (zd, 2)
    dwz_blk = jnp.kron(jnp.eye(k, dtype=jnp.float32), dwz)         # (k*zd, 2k) block-diag

    weights = (
        params["past_w"].astype(bf16), params["past_b"].reshape(1, -1),
        params["fut_w"].astype(bf16), params["fut_b"].reshape(1, -1),
        params["qz_w"][:md].astype(bf16), params["qz_w"][md:].astype(bf16),
        params["qz_b"].reshape(1, -1),
        pz_w.astype(bf16), pz_b,
        params["dec_w"][:md].astype(bf16), dwz.astype(bf16), dwz_blk.astype(bf16),
        params["dec_b"].reshape(1, -1),
    )

    kld_sum, recon_sum, div_sum = fused_unitraj_losses(
        pf, ff, y2, eq, ek, weights, zd=zd, k=k)

    kld_loss = kld_sum / M
    recon_loss = recon_sum / (M * 2)
    diverse_loss = div_sum / (M * k * 2)
    return kld_loss, recon_loss, diverse_loss


# ----------------------------- Main ------------------------------------------

if __name__ == "__main__":
    args = Args()
    B, T, N = 2, 8, 5   # N odd so N_team = (N-1)/2

    root = jax.random.PRNGKey(0)
    k_param, k_data, k_mask, k_noise = jax.random.split(root, 4)

    params = init_params(k_param, args)
    data = jax.random.normal(k_data, (B, T, N, 2), jnp.float32)
    mask_xy = (jax.random.uniform(k_mask, (B, T, N, 1)) < 0.8).astype(jnp.float32)
    mask = jnp.tile(mask_xy, (1, 1, 1, 2))                        # [B,T,N,2]

    kld_loss, recon_loss, diverse_loss = unitraj_forward(
        params, data, mask, args, k_noise)
    jax.block_until_ready((kld_loss, recon_loss, diverse_loss))
    print("KERNEL_OK")
</pallas_src>

<mosaic_0001>
module attributes {stable_mosaic.version = 11 : i64} {
  func.func @_unitraj_fused_kernel(%arg0: i32, %arg1: memref<80x17xbf16, #tpu.memory_space<vmem>>, %arg2: memref<80x9xbf16, #tpu.memory_space<vmem>>, %arg3: memref<80x2xf32, #tpu.memory_space<vmem>>, %arg4: memref<80x8xbf16, #tpu.memory_space<vmem>>, %arg5: memref<80x40xbf16, #tpu.memory_space<vmem>>, %arg6: memref<17x32xbf16, #tpu.memory_space<vmem>>, %arg7: memref<1x32xf32, #tpu.memory_space<vmem>>, %arg8: memref<9x32xbf16, #tpu.memory_space<vmem>>, %arg9: memref<1x32xf32, #tpu.memory_space<vmem>>, %arg10: memref<32x16xbf16, #tpu.memory_space<vmem>>, %arg11: memref<32x16xbf16, #tpu.memory_space<vmem>>, %arg12: memref<1x16xf32, #tpu.memory_space<vmem>>, %arg13: memref<32x16xbf16, #tpu.memory_space<vmem>>, %arg14: memref<1x16xf32, #tpu.memory_space<vmem>>, %arg15: memref<32x2xbf16, #tpu.memory_space<vmem>>, %arg16: memref<8x2xbf16, #tpu.memory_space<vmem>>, %arg17: memref<40x10xbf16, #tpu.memory_space<vmem>>, %arg18: memref<1x2xf32, #tpu.memory_space<vmem>>, %arg19: memref<8x128xf32, #tpu.memory_space<vmem>>) attributes {dimension_semantics = [#tpu.dimension_semantics<parallel>], iteration_bounds = array<i64: 1>, scalar_prefetch = 0 : i64, scratch_operands = 0 : i64, tpu.core_type = #tpu.core_type<tc>, window_params = [{transform_indices = @transform_0, window_bounds = array<i64: 80, 17>}, {transform_indices = @transform_1, window_bounds = array<i64: 80, 9>}, {transform_indices = @transform_2, window_bounds = array<i64: 80, 2>}, {transform_indices = @transform_3, window_bounds = array<i64: 80, 8>}, {transform_indices = @transform_4, window_bounds = array<i64: 80, 40>}, {pipeline_mode = #tpu.pipeline_mode<synchronous>, transform_indices = @transform_5, window_bounds = array<i64: 17, 32>}, {pipeline_mode = #tpu.pipeline_mode<synchronous>, transform_indices = @transform_6, window_bounds = array<i64: 1, 32>}, {pipeline_mode = #tpu.pipeline_mode<synchronous>, transform_indices = @transform_7, window_bounds = array<i64: 9, 32>}, {pipeline_mode = #tpu.pipeline_mode<synchronous>, transform_indices = @transform_8, window_bounds = array<i64: 1, 32>}, {pipeline_mode = #tpu.pipeline_mode<synchronous>, transform_indices = @transform_9, window_bounds = array<i64: 32, 16>}, {pipeline_mode = #tpu.pipeline_mode<synchronous>, transform_indices = @transform_10, window_bounds = array<i64: 32, 16>}, {pipeline_mode = #tpu.pipeline_mode<synchronous>, transform_indices = @transform_11, window_bounds = array<i64: 1, 16>}, {pipeline_mode = #tpu.pipeline_mode<synchronous>, transform_indices = @transform_12, window_bounds = array<i64: 32, 16>}, {pipeline_mode = #tpu.pipeline_mode<synchronous>, transform_indices = @transform_13, window_bounds = array<i64: 1, 16>}, {pipeline_mode = #tpu.pipeline_mode<synchronous>, transform_indices = @transform_14, window_bounds = array<i64: 32, 2>}, {pipeline_mode = #tpu.pipeline_mode<synchronous>, transform_indices = @transform_15, window_bounds = array<i64: 8, 2>}, {pipeline_mode = #tpu.pipeline_mode<synchronous>, transform_indices = @transform_16, window_bounds = array<i64: 40, 10>}, {pipeline_mode = #tpu.pipeline_mode<synchronous>, transform_indices = @transform_17, window_bounds = array<i64: 1, 2>}, {transform_indices = @transform_18, window_bounds = array<i64: 8, 128>}]} {
    %c80_i32 = arith.constant 80 : i32
    %0 = arith.muli %arg0, %c80_i32 : i32
    %1 = tpu.iota {dimensions = array<i32: 0>} : vector<80x1xi32>
    %2 = vector.broadcast %0 : i32 to vector<80x1xi32>
    %3 = arith.addi %2, %1 : vector<80x1xi32>
    %c80_i32_0 = arith.constant 80 : i32
    %4 = vector.broadcast %c80_i32_0 : i32 to vector<80x1xi32>
    %5 = arith.cmpi slt, %3, %4 : vector<80x1xi32>
    %6 = arith.extui %5 : vector<80x1xi1> to vector<80x1xi32>
    %7 = arith.sitofp %6 : vector<80x1xi32> to vector<80x1xf32>
    %c0 = arith.constant 0 : index
    %c0_1 = arith.constant 0 : index
    %8 = vector.load %arg3[%c0, %c0_1] : memref<80x2xf32, #tpu.memory_space<vmem>>, vector<80x2xf32>
    %c0_2 = arith.constant 0 : index
    %c0_3 = arith.constant 0 : index
    %9 = vector.load %arg16[%c0_2, %c0_3] : memref<8x2xbf16, #tpu.memory_space<vmem>>, vector<8x2xbf16>
    %c0_4 = arith.constant 0 : index
    %c0_5 = arith.constant 0 : index
    %10 = vector.load %arg1[%c0_4, %c0_5] : memref<80x17xbf16, #tpu.memory_space<vmem>>, vector<80x17xbf16>
    %c0_6 = arith.constant 0 : index
    %c0_7 = arith.constant 0 : index
    %11 = vector.load %arg6[%c0_6, %c0_7] : memref<17x32xbf16, #tpu.memory_space<vmem>>, vector<17x32xbf16>
    %cst = arith.constant dense<0.000000e+00> : vector<80x32xf32>
    %12 = tpu.matmul %10, %11, %cst {dimension_numbers = #tpu.dot_dimension_numbers<[1], [0], [0], [1], [0, 0, 1, 1], [], []>} : vector<80x17xbf16>, vector<17x32xbf16>, vector<80x32xf32> -> vector<80x32xf32>
    %c0_8 = arith.constant 0 : index
    %c0_9 = arith.constant 0 : index
    %13 = vector.load %arg7[%c0_8, %c0_9] : memref<1x32xf32, #tpu.memory_space<vmem>>, vector<1x32xf32>
    %14 = vector.broadcast %13 : vector<1x32xf32> to vector<80x32xf32>
    %15 = arith.addf %12, %14 : vector<80x32xf32>
    %c0_10 = arith.constant 0 : index
    %c0_11 = arith.constant 0 : index
    %16 = vector.load %arg2[%c0_10, %c0_11] : memref<80x9xbf16, #tpu.memory_space<vmem>>, vector<80x9xbf16>
    %c0_12 = arith.constant 0 : index
    %c0_13 = arith.constant 0 : index
    %17 = vector.load %arg8[%c0_12, %c0_13] : memref<9x32xbf16, #tpu.memory_space<vmem>>, vector<9x32xbf16>
    %cst_14 = arith.constant dense<0.000000e+00> : vector<80x32xf32>
    %18 = tpu.matmul %16, %17, %cst_14 {dimension_numbers = #tpu.dot_dimension_numbers<[1], [0], [0], [1], [0, 0, 1, 1], [], []>} : vector<80x9xbf16>, vector<9x32xbf16>, vector<80x32xf32> -> vector<80x32xf32>
    %c0_15 = arith.constant 0 : index
    %c0_16 = arith.constant 0 : index
    %19 = vector.load %arg9[%c0_15, %c0_16] : memref<1x32xf32, #tpu.memory_space<vmem>>, vector<1x32xf32>
    %20 = vector.broadcast %19 : vector<1x32xf32> to vector<80x32xf32>
    %21 = arith.addf %18, %20 : vector<80x32xf32>
    %c0_17 = arith.constant 0 : index
    %c0_18 = arith.constant 0 : index
    %22 = vector.load %arg10[%c0_17, %c0_18] : memref<32x16xbf16, #tpu.memory_space<vmem>>, vector<32x16xbf16>
    %23 = arith.truncf %15 : vector<80x32xf32> to vector<80x32xbf16>
    %cst_19 = arith.constant dense<0.000000e+00> : vector<80x16xf32>
    %24 = tpu.matmul %23, %22, %cst_19 {dimension_numbers = #tpu.dot_dimension_numbers<[1], [0], [0], [1], [0, 0, 1, 1], [], []>} : vector<80x32xbf16>, vector<32x16xbf16>, vector<80x16xf32> -> vector<80x16xf32>
    %c0_20 = arith.constant 0 : index
    %c0_21 = arith.constant 0 : index
    %25 = vector.load %arg11[%c0_20, %c0_21] : memref<32x16xbf16, #tpu.memory_space<vmem>>, vector<32x16xbf16>
    %26 = arith.truncf %21 : vector<80x32xf32> to vector<80x32xbf16>
    %cst_22 = arith.constant dense<0.000000e+00> : vector<80x16xf32>
    %27 = tpu.matmul %26, %25, %cst_22 {dimension_numbers = #tpu.dot_dimension_numbers<[1], [0], [0], [1], [0, 0, 1, 1], [], []>} : vector<80x32xbf16>, vector<32x16xbf16>, vector<80x16xf32> -> vector<80x16xf32>
    %28 = arith.addf %24, %27 : vector<80x16xf32>
    %c0_23 = arith.constant 0 : index
    %c0_24 = arith.constant 0 : index
    %29 = vector.load %arg12[%c0_23, %c0_24] : memref<1x16xf32, #tpu.memory_space<vmem>>, vector<1x16xf32>
    %30 = vector.broadcast %29 : vector<1x16xf32> to vector<80x16xf32>
    %31 = arith.addf %28, %30 : vector<80x16xf32>
    %32 = vector.extract_strided_slice %31 {offsets = [0, 0], sizes = [80, 8], strides = [1, 1]} : vector<80x16xf32> to vector<80x8xf32>
    %33 = vector.extract_strided_slice %31 {offsets = [0, 8], sizes = [80, 8], strides = [1, 1]} : vector<80x16xf32> to vector<80x8xf32>
    %cst_25 = arith.constant 5.000000e-01 : f32
    %34 = vector.broadcast %cst_25 : f32 to vector<80x8xf32>
    %35 = arith.mulf %34, %33 : vector<80x8xf32>
    %36 = math.exp %35 : vector<80x8xf32>
    %c0_26 = arith.constant 0 : index
    %c0_27 = arith.constant 0 : index
    %37 = vector.load %arg13[%c0_26, %c0_27] : memref<32x16xbf16, #tpu.memory_space<vmem>>, vector<32x16xbf16>
    %38 = arith.truncf %15 : vector<80x32xf32> to vector<80x32xbf16>
    %cst_28 = arith.constant dense<0.000000e+00> : vector<80x16xf32>
    %39 = tpu.matmul %38, %37, %cst_28 {dimension_numbers = #tpu.dot_dimension_numbers<[1], [0], [0], [1], [0, 0, 1, 1], [], []>} : vector<80x32xbf16>, vector<32x16xbf16>, vector<80x16xf32> -> vector<80x16xf32>
    %c0_29 = arith.constant 0 : index
    %c0_30 = arith.constant 0 : index
    %40 = vector.load %arg14[%c0_29, %c0_30] : memref<1x16xf32, #tpu.memory_space<vmem>>, vector<1x16xf32>
    %41 = vector.broadcast %40 : vector<1x16xf32> to vector<80x16xf32>
    %42 = arith.addf %39, %41 : vector<80x16xf32>
    %43 = vector.extract_strided_slice %42 {offsets = [0, 0], sizes = [80, 8], strides = [1, 1]} : vector<80x16xf32> to vector<80x8xf32>
    %44 = vector.extract_strided_slice %42 {offsets = [0, 8], sizes = [80, 8], strides = [1, 1]} : vector<80x16xf32> to vector<80x8xf32>
    %cst_31 = arith.constant 5.000000e-01 : f32
    %45 = vector.broadcast %cst_31 : f32 to vector<80x8xf32>
    %46 = arith.mulf %45, %44 : vector<80x8xf32>
    %47 = math.exp %46 : vector<80x8xf32>
    %48 = arith.subf %44, %33 : vector<80x8xf32>
    %49 = arith.mulf %36, %36 : vector<80x8xf32>
    %50 = arith.subf %32, %43 : vector<80x8xf32>
    %51 = arith.mulf %50, %50 : vector<80x8xf32>
    %52 = arith.addf %49, %51 : vector<80x8xf32>
    %53 = arith.mulf %47, %47 : vector<80x8xf32>
    %54 = arith.divf %52, %53 : vector<80x8xf32>
    %55 = arith.addf %48, %54 : vector<80x8xf32>
    %cst_32 = arith.constant 1.000000e+00 : f32
    %56 = vector.broadcast %cst_32 : f32 to vector<80x8xf32>
    %57 = arith.subf %55, %56 : vector<80x8xf32>
    %cst_33 = arith.constant 5.000000e-01 : f32
    %58 = vector.broadcast %cst_33 : f32 to vector<80x8xf32>
    %59 = arith.mulf %58, %57 : vector<80x8xf32>
    %60 = vector.broadcast %7 : vector<80x1xf32> to vector<80x8xf32>
    %61 = arith.mulf %59, %60 : vector<80x8xf32>
    %62 = vector.shape_cast %61 : vector<80x8xf32> to vector<1x80x8xf32>
    %cst_34 = arith.constant dense<0.000000e+00> : vector<1xf32>
    %63 = vector.multi_reduction <add>, %62, %cst_34 [1, 2] : vector<1x80x8xf32> to vector<1xf32>
    %64 = vector.shape_cast %63 : vector<1xf32> to vector<1x1x1xf32>
    %65 = vector.extract %64[0, 0, 0] : f32 from vector<1x1x1xf32>
    %c0_35 = arith.constant 0 : index
    %c0_36 = arith.constant 0 : index
    %66 = vector.load %arg4[%c0_35, %c0_36] : memref<80x8xbf16, #tpu.memory_space<vmem>>, vector<80x8xbf16>
    %67 = arith.extf %66 : vector<80x8xbf16> to vector<80x8xf32>
    %68 = arith.mulf %36, %67 : vector<80x8xf32>
    %69 = arith.addf %32, %68 : vector<80x8xf32>
    %c0_37 = arith.constant 0 : index
    %c0_38 = arith.constant 0 : index
    %70 = vector.load %arg15[%c0_37, %c0_38] : memref<32x2xbf16, #tpu.memory_space<vmem>>, vector<32x2xbf16>
    %71 = arith.truncf %15 : vector<80x32xf32> to vector<80x32xbf16>
    %cst_39 = arith.constant dense<0.000000e+00> : vector<80x2xf32>
    %72 = tpu.matmul %71, %70, %cst_39 {dimension_numbers = #tpu.dot_dimension_numbers<[1], [0], [0], [1], [0, 0, 1, 1], [], []>} : vector<80x32xbf16>, vector<32x2xbf16>, vector<80x2xf32> -> vector<80x2xf32>
    %c0_40 = arith.constant 0 : index
    %c0_41 = arith.constant 0 : index
    %73 = vector.load %arg18[%c0_40, %c0_41] : memref<1x2xf32, #tpu.memory_space<vmem>>, vector<1x2xf32>
    %74 = vector.broadcast %73 : vector<1x2xf32> to vector<80x2xf32>
    %75 = arith.addf %72, %74 : vector<80x2xf32>
    %76 = arith.truncf %69 : vector<80x8xf32> to vector<80x8xbf16>
    %cst_42 = arith.constant dense<0.000000e+00> : vector<80x2xf32>
    %77 = tpu.matmul %76, %9, %cst_42 {dimension_numbers = #tpu.dot_dimension_numbers<[1], [0], [0], [1], [0, 0, 1, 1], [], []>} : vector<80x8xbf16>, vector<8x2xbf16>, vector<80x2xf32> -> vector<80x2xf32>
    %78 = arith.addf %75, %77 : vector<80x2xf32>
    %79 = arith.subf %78, %8 : vector<80x2xf32>
    %80 = vector.broadcast %7 : vector<80x1xf32> to vector<80x2xf32>
    %81 = arith.mulf %79, %80 : vector<80x2xf32>
    %82 = arith.mulf %81, %81 : vector<80x2xf32>
    %83 = vector.shape_cast %82 : vector<80x2xf32> to vector<1x80x2xf32>
    %cst_43 = arith.constant dense<0.000000e+00> : vector<1xf32>
    %84 = vector.multi_reduction <add>, %83, %cst_43 [1, 2] : vector<1x80x2xf32> to vector<1xf32>
    %85 = vector.shape_cast %84 : vector<1xf32> to vector<1x1x1xf32>
    %86 = vector.extract %85[0, 0, 0] : f32 from vector<1x1x1xf32>
    %87 = arith.truncf %43 : vector<80x8xf32> to vector<80x8xbf16>
    %cst_44 = arith.constant dense<0.000000e+00> : vector<80x2xf32>
    %88 = tpu.matmul %87, %9, %cst_44 {dimension_numbers = #tpu.dot_dimension_numbers<[1], [0], [0], [1], [0, 0, 1, 1], [], []>} : vector<80x8xbf16>, vector<8x2xbf16>, vector<80x2xf32> -> vector<80x2xf32>
    %89 = arith.addf %75, %88 : vector<80x2xf32>
    %90 = arith.subf %89, %8 : vector<80x2xf32>
    %91 = tpu.concatenate %47, %47, %47, %47, %47 in 1 : vector<80x8xf32>, vector<80x8xf32>, vector<80x8xf32>, vector<80x8xf32>, vector<80x8xf32> -> vector<80x40xf32>
    %c0_45 = arith.constant 0 : index
    %c0_46 = arith.constant 0 : index
    %92 = vector.load %arg5[%c0_45, %c0_46] : memref<80x40xbf16, #tpu.memory_space<vmem>>, vector<80x40xbf16>
    %93 = arith.extf %92 : vector<80x40xbf16> to vector<80x40xf32>
    %94 = arith.mulf %91, %93 : vector<80x40xf32>
    %c0_47 = arith.constant 0 : index
    %c0_48 = arith.constant 0 : index
    %95 = vector.load %arg17[%c0_47, %c0_48] : memref<40x10xbf16, #tpu.memory_space<vmem>>, vector<40x10xbf16>
    %96 = arith.truncf %94 : vector<80x40xf32> to vector<80x40xbf16>
    %cst_49 = arith.constant dense<0.000000e+00> : vector<80x10xf32>
    %97 = tpu.matmul %96, %95, %cst_49 {dimension_numbers = #tpu.dot_dimension_numbers<[1], [0], [0], [1], [0, 0, 1, 1], [], []>} : vector<80x40xbf16>, vector<40x10xbf16>, vector<80x10xf32> -> vector<80x10xf32>
    %98 = tpu.concatenate %90, %90, %90, %90, %90 in 1 : vector<80x2xf32>, vector<80x2xf32>, vector<80x2xf32>, vector<80x2xf32>, vector<80x2xf32> -> vector<80x10xf32>
    %99 = arith.addf %98, %97 : vector<80x10xf32>
    %100 = vector.broadcast %7 : vector<80x1xf32> to vector<80x10xf32>
    %101 = arith.mulf %99, %100 : vector<80x10xf32>
    %102 = arith.mulf %101, %101 : vector<80x10xf32>
    %103 = vector.shape_cast %102 : vector<80x10xf32> to vector<1x80x10xf32>
    %cst_50 = arith.constant dense<0.000000e+00> : vector<1xf32>
    %104 = vector.multi_reduction <add>, %103, %cst_50 [1, 2] : vector<1x80x10xf32> to vector<1xf32>
    %105 = vector.shape_cast %104 : vector<1xf32> to vector<1x1x1xf32>
    %106 = vector.extract %105[0, 0, 0] : f32 from vector<1x1x1xf32>
    %107 = tpu.iota {dimensions = array<i32: 0>} : vector<8x128xi32>
    %108 = tpu.iota {dimensions = array<i32: 1>} : vector<8x128xi32>
    %c0_i32 = arith.constant 0 : i32
    %109 = vector.broadcast %c0_i32 : i32 to vector<8x128xi32>
    %110 = arith.cmpi eq, %107, %109 : vector<8x128xi32>
    %c0_i32_51 = arith.constant 0 : i32
    %111 = vector.broadcast %c0_i32_51 : i32 to vector<8x128xi32>
    %112 = arith.cmpi eq, %108, %111 : vector<8x128xi32>
    %113 = arith.andi %110, %112 : vector<8x128xi1>
    %c0_i32_52 = arith.constant 0 : i32
    %114 = vector.broadcast %c0_i32_52 : i32 to vector<8x128xi32>
    %115 = arith.cmpi eq, %107, %114 : vector<8x128xi32>
    %c1_i32 = arith.constant 1 : i32
    %116 = vector.broadcast %c1_i32 : i32 to vector<8x128xi32>
    %117 = arith.cmpi eq, %108, %116 : vector<8x128xi32>
    %118 = arith.andi %115, %117 : vector<8x128xi1>
    %c0_i32_53 = arith.constant 0 : i32
    %119 = vector.broadcast %c0_i32_53 : i32 to vector<8x128xi32>
    %120 = arith.cmpi eq, %107, %119 : vector<8x128xi32>
    %c2_i32 = arith.constant 2 : i32
    %121 = vector.broadcast %c2_i32 : i32 to vector<8x128xi32>
    %122 = arith.cmpi eq, %108, %121 : vector<8x128xi32>
    %123 = arith.andi %120, %122 : vector<8x128xi1>
    %cst_54 = arith.constant 0.000000e+00 : f32
    %124 = vector.broadcast %106 : f32 to vector<8x128xf32>
    %125 = vector.broadcast %cst_54 : f32 to vector<8x128xf32>
    %126 = arith.select %123, %124, %125 : vector<8x128xi1>, vector<8x128xf32>
    %127 = vector.broadcast %86 : f32 to vector<8x128xf32>
    %128 = arith.select %118, %127, %126 : vector<8x128xi1>, vector<8x128xf32>
    %129 = vector.broadcast %65 : f32 to vector<8x128xf32>
    %130 = arith.select %113, %129, %128 : vector<8x128xi1>, vector<8x128xf32>
    %c0_55 = arith.constant 0 : index
    %c0_56 = arith.constant 0 : index
    %131 = vector.load %arg19[%c0_55, %c0_56] : memref<8x128xf32, #tpu.memory_space<vmem>>, vector<8x128xf32>
    tpu.vector_store %arg19[%c0_55, %c0_56], %130 {strides = array<i32>} : memref<8x128xf32, #tpu.memory_space<vmem>>, vector<8x128xf32>,
    return
  }
  func.func @transform_0(%arg0: i32) -> (i32, i32) {
    %c0_i32 = arith.constant 0 : i32
    %c0_i32_0 = arith.constant 0 : i32
    return %arg0, %c0_i32 : i32, i32
  }
  func.func @transform_1(%arg0: i32) -> (i32, i32) {
    %c0_i32 = arith.constant 0 : i32
    %c0_i32_0 = arith.constant 0 : i32
    return %arg0, %c0_i32 : i32, i32
  }
  func.func @transform_2(%arg0: i32) -> (i32, i32) {
    %c0_i32 = arith.constant 0 : i32
    %c0_i32_0 = arith.constant 0 : i32
    return %arg0, %c0_i32 : i32, i32
  }
  func.func @transform_3(%arg0: i32) -> (i32, i32) {
    %c0_i32 = arith.constant 0 : i32
    %c0_i32_0 = arith.constant 0 : i32
    return %arg0, %c0_i32 : i32, i32
  }
  func.func @transform_4(%arg0: i32) -> (i32, i32) {
    %c0_i32 = arith.constant 0 : i32
    %c0_i32_0 = arith.constant 0 : i32
    return %arg0, %c0_i32 : i32, i32
  }
  func.func @transform_5(%arg0: i32) -> (i32, i32) {
    %c0_i32 = arith.constant 0 : i32
    %c0_i32_0 = arith.constant 0 : i32
    %c0_i32_1 = arith.constant 0 : i32
    return %c0_i32, %c0_i32_0 : i32, i32
  }
  func.func @transform_6(%arg0: i32) -> (i32, i32) {
    %c0_i32 = arith.constant 0 : i32
    %c0_i32_0 = arith.constant 0 : i32
    %c0_i32_1 = arith.constant 0 : i32
    return %c0_i32, %c0_i32_0 : i32, i32
  }
  func.func @transform_7(%arg0: i32) -> (i32, i32) {
    %c0_i32 = arith.constant 0 : i32
    %c0_i32_0 = arith.constant 0 : i32
    %c0_i32_1 = arith.constant 0 : i32
    return %c0_i32, %c0_i32_0 : i32, i32
  }
  func.func @transform_8(%arg0: i32) -> (i32, i32) {
    %c0_i32 = arith.constant 0 : i32
    %c0_i32_0 = arith.constant 0 : i32
    %c0_i32_1 = arith.constant 0 : i32
    return %c0_i32, %c0_i32_0 : i32, i32
  }
  func.func @transform_9(%arg0: i32) -> (i32, i32) {
    %c0_i32 = arith.constant 0 : i32
    %c0_i32_0 = arith.constant 0 : i32
    %c0_i32_1 = arith.constant 0 : i32
    return %c0_i32, %c0_i32_0 : i32, i32
  }
  func.func @transform_10(%arg0: i32) -> (i32, i32) {
    %c0_i32 = arith.constant 0 : i32
    %c0_i32_0 = arith.constant 0 : i32
    %c0_i32_1 = arith.constant 0 : i32
    return %c0_i32, %c0_i32_0 : i32, i32
  }
  func.func @transform_11(%arg0: i32) -> (i32, i32) {
    %c0_i32 = arith.constant 0 : i32
    %c0_i32_0 = arith.constant 0 : i32
    %c0_i32_1 = arith.constant 0 : i32
    return %c0_i32, %c0_i32_0 : i32, i32
  }
  func.func @transform_12(%arg0: i32) -> (i32, i32) {
    %c0_i32 = arith.constant 0 : i32
    %c0_i32_0 = arith.constant 0 : i32
    %c0_i32_1 = arith.constant 0 : i32
    return %c0_i32, %c0_i32_0 : i32, i32
  }
  func.func @transform_13(%arg0: i32) -> (i32, i32) {
    %c0_i32 = arith.constant 0 : i32
    %c0_i32_0 = arith.constant 0 : i32
    %c0_i32_1 = arith.constant 0 : i32
    return %c0_i32, %c0_i32_0 : i32, i32
  }
  func.func @transform_14(%arg0: i32) -> (i32, i32) {
    %c0_i32 = arith.constant 0 : i32
    %c0_i32_0 = arith.constant 0 : i32
    %c0_i32_1 = arith.constant 0 : i32
    return %c0_i32, %c0_i32_0 : i32, i32
  }
  func.func @transform_15(%arg0: i32) -> (i32, i32) {
    %c0_i32 = arith.constant 0 : i32
    %c0_i32_0 = arith.constant 0 : i32
    %c0_i32_1 = arith.constant 0 : i32
    return %c0_i32, %c0_i32_0 : i32, i32
  }
  func.func @transform_16(%arg0: i32) -> (i32, i32) {
    %c0_i32 = arith.constant 0 : i32
    %c0_i32_0 = arith.constant 0 : i32
    %c0_i32_1 = arith.constant 0 : i32
    return %c0_i32, %c0_i32_0 : i32, i32
  }
  func.func @transform_17(%arg0: i32) -> (i32, i32) {
    %c0_i32 = arith.constant 0 : i32
    %c0_i32_0 = arith.constant 0 : i32
    %c0_i32_1 = arith.constant 0 : i32
    return %c0_i32, %c0_i32_0 : i32, i32
  }
  func.func @transform_18(%arg0: i32) -> (i32, i32) {
    %c0_i32 = arith.constant 0 : i32
    %c0_i32_0 = arith.constant 0 : i32
    return %arg0, %c0_i32 : i32, i32
  }
}

</mosaic_0001>

<llo_original>
// kernel: tpu_custom_call.1
$region0: #{tpu_custom_call.1}
  #allocation0 [shape = 'u32[]', space=smem, size = 0x4, offset = 0x4, fixed_abs, tag = 'smem constant byte address 0x4 - core index']
  #allocation1 [shape = 'u32[144,128]{1,0:T(1,128)}', space=vmem, size = 0x12000, scoped, tag = 'internal scratch']
  %s0 = inlined_call_operand.vmem [shape: bf16[80,17], index: 0, kind: input, shape index: {}]
  %s1 = inlined_call_operand.vmem [shape: bf16[80,9], index: 1, kind: input, shape index: {}]
  %s2 = inlined_call_operand.vmem [shape: f32[80,2], index: 2, kind: input, shape index: {}]
  %s3 = inlined_call_operand.vmem [shape: bf16[80,8], index: 3, kind: input, shape index: {}]
  %s4 = inlined_call_operand.vmem [shape: bf16[80,40], index: 4, kind: input, shape index: {}]
  %s5 = inlined_call_operand.vmem [shape: bf16[17,32], index: 5, kind: input, shape index: {}]
  %s6 = inlined_call_operand.vmem [shape: f32[1,32], index: 6, kind: input, shape index: {}]
  %s7 = inlined_call_operand.vmem [shape: bf16[9,32], index: 7, kind: input, shape index: {}]
  %s8 = inlined_call_operand.vmem [shape: f32[1,32], index: 8, kind: input, shape index: {}]
  %s9 = inlined_call_operand.vmem [shape: bf16[32,16], index: 9, kind: input, shape index: {}]
  %s10 = inlined_call_operand.vmem [shape: bf16[32,16], index: 10, kind: input, shape index: {}]
  %s11 = inlined_call_operand.vmem [shape: f32[1,16], index: 11, kind: input, shape index: {}]
  %s12 = inlined_call_operand.vmem [shape: bf16[32,16], index: 12, kind: input, shape index: {}]
  %s13 = inlined_call_operand.vmem [shape: f32[1,16], index: 13, kind: input, shape index: {}]
  %s14 = inlined_call_operand.vmem [shape: bf16[32,2], index: 14, kind: input, shape index: {}]
  %s15 = inlined_call_operand.vmem [shape: bf16[8,2], index: 15, kind: input, shape index: {}]
  %s16 = inlined_call_operand.vmem [shape: bf16[40,10], index: 16, kind: input, shape index: {}]
  %s17 = inlined_call_operand.vmem [shape: f32[1,2], index: 17, kind: input, shape index: {}]
  %s18 = inlined_call_operand.hbm [shape: f32[8,128], index: 18, kind: output, shape index: {}]
  %s19 = sld [smem:[#allocation0]]
  $region82: #{tpu_custom_call.1} parent=0
    _
  %s21 = ssub.s32 1, %s19
  %s22 = scalar_select 0, %s21, %s19
  $region1: #{tpu_custom_call.1} parent=0
    #allocation2 [shape = 'u8[4096]{0}', space=vmem, size = 0x1000, scoped, tag = 'output window, operand 0, single buffered']
    #allocation3 [shape = 's32[1]{0}', space=sflag, size = 0x4, scoped, tag = 'scoped memory for tpu_custom_call.1']
    %23 = vsyncpa [#allocation3], 0
    // Predicated region
    $region2: #{tpu_custom_call.1} parent=1 // pred_check
      _
    $region3: #{tpu_custom_call.1} parent=1 // pred_check_branch
      %25 = sbr.rel (0) target = $region5
    $region4: #{tpu_custom_call.1} parent=1 // pred_region
      _
    $region5: #{tpu_custom_call.1} parent=1 // pred_fallthru
      _
    // Predicated region
    $region6: #{tpu_custom_call.1} parent=1 // pred_check
      _
    $region7: #{tpu_custom_call.1} parent=1 // pred_check_branch
      %27 = sbr.rel (0) target = $region9
    $region8: #{tpu_custom_call.1} parent=1 // pred_region
      _
    $region9: #{tpu_custom_call.1} parent=1 // pred_fallthru
      _
    // Predicated region
    $region10: #{tpu_custom_call.1} parent=1 // pred_check
      _
    $region11: #{tpu_custom_call.1} parent=1 // pred_check_branch
      %29 = sbr.rel (0) target = $region13
    $region12: #{tpu_custom_call.1} parent=1 // pred_region
      _
    $region13: #{tpu_custom_call.1} parent=1 // pred_fallthru
      _
    // Predicated region
    $region14: #{tpu_custom_call.1} parent=1 // pred_check
      _
    $region15: #{tpu_custom_call.1} parent=1 // pred_check_branch
      %31 = sbr.rel (0) target = $region17
    $region16: #{tpu_custom_call.1} parent=1 // pred_region
      _
    $region17: #{tpu_custom_call.1} parent=1 // pred_fallthru
      _
    // Predicated region
    $region18: #{tpu_custom_call.1} parent=1 // pred_check
      _
    $region19: #{tpu_custom_call.1} parent=1 // pred_check_branch
      %33 = sbr.rel (0) target = $region21
    $region20: #{tpu_custom_call.1} parent=1 // pred_region
      _
    $region21: #{tpu_custom_call.1} parent=1 // pred_fallthru
      _
    // Predicated region
    $region22: #{tpu_custom_call.1} parent=1 // pred_check
      _
    $region23: #{tpu_custom_call.1} parent=1 // pred_check_branch
      %35 = sbr.rel (0) target = $region25
    $region24: #{tpu_custom_call.1} parent=1 // pred_region
      _
    $region25: #{tpu_custom_call.1} parent=1 // pred_fallthru
      _
    // Predicated region
    $region26: #{tpu_custom_call.1} parent=1 // pred_check
      _
    $region27: #{tpu_custom_call.1} parent=1 // pred_check_branch
      %37 = sbr.rel (0) target = $region29
    $region28: #{tpu_custom_call.1} parent=1 // pred_region
      _
    $region29: #{tpu_custom_call.1} parent=1 // pred_fallthru
      _
    // Predicated region
    $region30: #{tpu_custom_call.1} parent=1 // pred_check
      _
    $region31: #{tpu_custom_call.1} parent=1 // pred_check_branch
      %39 = sbr.rel (0) target = $region33
    $region32: #{tpu_custom_call.1} parent=1 // pred_region
      _
    $region33: #{tpu_custom_call.1} parent=1 // pred_fallthru
      _
    // Predicated region
    $region34: #{tpu_custom_call.1} parent=1 // pred_check
      _
    $region35: #{tpu_custom_call.1} parent=1 // pred_check_branch
      %41 = sbr.rel (0) target = $region37
    $region36: #{tpu_custom_call.1} parent=1 // pred_region
      _
    $region37: #{tpu_custom_call.1} parent=1 // pred_fallthru
      _
    // Predicated region
    $region38: #{tpu_custom_call.1} parent=1 // pred_check
      _
    $region39: #{tpu_custom_call.1} parent=1 // pred_check_branch
      %43 = sbr.rel (0) target = $region41
    $region40: #{tpu_custom_call.1} parent=1 // pred_region
      _
    $region41: #{tpu_custom_call.1} parent=1 // pred_fallthru
      _
    // Predicated region
    $region42: #{tpu_custom_call.1} parent=1 // pred_check
      _
    $region43: #{tpu_custom_call.1} parent=1 // pred_check_branch
      %45 = sbr.rel (0) target = $region45
    $region44: #{tpu_custom_call.1} parent=1 // pred_region
      _
    $region45: #{tpu_custom_call.1} parent=1 // pred_fallthru
      _
    // Predicated region
    $region46: #{tpu_custom_call.1} parent=1 // pred_check
      _
    $region47: #{tpu_custom_call.1} parent=1 // pred_check_branch
      %47 = sbr.rel (0) target = $region49
    $region48: #{tpu_custom_call.1} parent=1 // pred_region
      _
    $region49: #{tpu_custom_call.1} parent=1 // pred_fallthru
      _
    // Predicated region
    $region50: #{tpu_custom_call.1} parent=1 // pred_check
      _
    $region51: #{tpu_custom_call.1} parent=1 // pred_check_branch
      %49 = sbr.rel (0) target = $region53
    $region52: #{tpu_custom_call.1} parent=1 // pred_region
      _
    $region53: #{tpu_custom_call.1} parent=1 // pred_fallthru
      _
    // Predicated region
    $region54: #{tpu_custom_call.1} parent=1 // pred_check
      _
    $region55: #{tpu_custom_call.1} parent=1 // pred_check_branch
      %51 = sbr.rel (0) target = $region57
    $region56: #{tpu_custom_call.1} parent=1 // pred_region
      _
    $region57: #{tpu_custom_call.1} parent=1 // pred_fallthru
      _
    // Predicated region
    $region58: #{tpu_custom_call.1} parent=1 // pred_check
      _
    $region59: #{tpu_custom_call.1} parent=1 // pred_check_branch
      %53 = sbr.rel (0) target = $region61
    $region60: #{tpu_custom_call.1} parent=1 // pred_region
      _
    $region61: #{tpu_custom_call.1} parent=1 // pred_fallthru
      _
    // Predicated region
    $region62: #{tpu_custom_call.1} parent=1 // pred_check
      _
    $region63: #{tpu_custom_call.1} parent=1 // pred_check_branch
      %55 = sbr.rel (0) target = $region65
    $region64: #{tpu_custom_call.1} parent=1 // pred_region
      _
    $region65: #{tpu_custom_call.1} parent=1 // pred_fallthru
      _
    // Predicated region
    $region66: #{tpu_custom_call.1} parent=1 // pred_check
      _
    $region67: #{tpu_custom_call.1} parent=1 // pred_check_branch
      %57 = sbr.rel (0) target = $region69
    $region68: #{tpu_custom_call.1} parent=1 // pred_region
      _
    $region69: #{tpu_custom_call.1} parent=1 // pred_fallthru
      _
    // Predicated region
    $region70: #{tpu_custom_call.1} parent=1 // pred_check
      _
    $region71: #{tpu_custom_call.1} parent=1 // pred_check_branch
      %59 = sbr.rel (0) target = $region73
    $region72: #{tpu_custom_call.1} parent=1 // pred_region
      _
    $region73: #{tpu_custom_call.1} parent=1 // pred_fallthru
      _
    %s61 = smul.u32 0, 80
    %v62 = vlaneseq
    %v63 = vshrl.u32 %v62, 7
    %v64 = vadd.s32 %v63, 8
    %v65 = vadd.s32 %v63, 16
    %v66 = vadd.s32 %v63, 24
    %v67 = vadd.s32 %v63, 32
    %v68 = vadd.s32 %v63, 40
    %v69 = vadd.s32 %v63, 48
    %v70 = vadd.s32 %v63, 56
    %v71 = vadd.s32 %v63, 64
    %v72 = vadd.s32 %v63, 72
    %v73 = vstv %s61
    %v74 = vadd.s32 %v73, %v63
    %v75 = vadd.s32 %v73, %v64
    %v76 = vadd.s32 %v73, %v65
    %v77 = vadd.s32 %v73, %v66
    %v78 = vadd.s32 %v73, %v67
    %v79 = vadd.s32 %v73, %v68
    %v80 = vadd.s32 %v73, %v69
    %v81 = vadd.s32 %v73, %v70
    %v82 = vadd.s32 %v73, %v71
    %v83 = vadd.s32 %v73, %v72
    %vm84 = vcmp.lt.s32.totalorder %v74, 80
    %vm85 = vcmp.lt.s32.totalorder %v75, 80
    %vm86 = vcmp.lt.s32.totalorder %v76, 80
    %vm87 = vcmp.lt.s32.totalorder %v77, 80
    %vm88 = vcmp.lt.s32.totalorder %v78, 80
    %vm89 = vcmp.lt.s32.totalorder %v79, 80
    %vm90 = vcmp.lt.s32.totalorder %v80, 80
    %vm91 = vcmp.lt.s32.totalorder %v81, 80
    %vm92 = vcmp.lt.s32.totalorder %v82, 80
    %vm93 = vcmp.lt.s32.totalorder %v83, 80
    %v94 = vsel %vm84, 1, 0
    %v95 = vsel %vm85, 1, 0
    %v96 = vsel %vm86, 1, 0
    %v97 = vsel %vm87, 1, 0
    %v98 = vsel %vm88, 1, 0
    %v99 = vsel %vm89, 1, 0
    %v100 = vsel %vm90, 1, 0
    %v101 = vsel %vm91, 1, 0
    %v102 = vsel %vm92, 1, 0
    %v103 = vsel %vm93, 1, 0
    %v104 = vcvt.s32.f32 %v94
    %v105 = vcvt.s32.f32 %v95
    %v106 = vcvt.s32.f32 %v96
    %v107 = vcvt.s32.f32 %v97
    %v108 = vcvt.s32.f32 %v98
    %v109 = vcvt.s32.f32 %v99
    %v110 = vcvt.s32.f32 %v100
    %v111 = vcvt.s32.f32 %v101
    %v112 = vcvt.s32.f32 %v102
    %v113 = vcvt.s32.f32 %v103
    %v114 = vld [vmem:[%s2] sm:$0xff]
    %v115 = vld [vmem:[%s2 + $0x8] sm:$0xff]
    %v116 = vld [vmem:[%s2 + $0x10] sm:$0xff]
    %v117 = vld [vmem:[%s2 + $0x18] sm:$0xff]
    %v118 = vld [vmem:[%s2 + $0x20] sm:$0xff]
    %v119 = vld [vmem:[%s2 + $0x28] sm:$0xff]
    %v120 = vld [vmem:[%s2 + $0x30] sm:$0xff]
    %v121 = vld [vmem:[%s2 + $0x38] sm:$0xff]
    %v122 = vld [vmem:[%s2 + $0x40] sm:$0xff]
    %v123 = vld [vmem:[%s2 + $0x48] sm:$0xff]
    %v124 = vld [vmem:[%s15] sm:$0xf]
    %v125 = vld [vmem:[%s0] sm:$0xf]
    %v126 = vld [vmem:[%s0 + $0x4] sm:$0xf]
    %v127 = vld [vmem:[%s0 + $0x8] sm:$0xf]
    %v128 = vld [vmem:[%s0 + $0xc] sm:$0xf]
    %v129 = vld [vmem:[%s0 + $0x10] sm:$0xf]
    %v130 = vld [vmem:[%s0 + $0x14] sm:$0xf]
    %v131 = vld [vmem:[%s0 + $0x18] sm:$0xf]
    %v132 = vld [vmem:[%s0 + $0x1c] sm:$0xf]
    %v133 = vld [vmem:[%s0 + $0x20] sm:$0xf]
    %v134 = vld [vmem:[%s0 + $0x24] sm:$0xf]
    %v135 = vld [vmem:[%s5] sm:$0xf]
    %v136 = vld [vmem:[%s5 + $0x4] sm:$0xf]
    %v137 = vld [vmem:[%s5 + $0x8] sm:$0x1]
    %v138 = vld [vmem:[%s6] sm:$0x1]
    %v140 = vlaneseq
    %v141 = vshrl.u32 %v140, 7
    %v142 = vsub.s32 0, %v141
    %v143 = vrot.slane %v138, %v142
    %v155 = vunpack.c.l.b16 %v125
    %v156 = vunpack.c.l.b16 %v126
    %v157 = vunpack.c.l.b16 %v127
    %v158 = vunpack.c.l.b16 %v128
    %v159 = vunpack.c.l.b16 %v129
    %v160 = vunpack.c.l.b16 %v130
    %v161 = vunpack.c.l.b16 %v131
    %v162 = vunpack.c.l.b16 %v132
    %v163 = vunpack.c.l.b16 %v133
    %v164 = vunpack.c.l.b16 %v134
    %v165 = vpack.c.b16 %v156, %v155
    %v166 = vpack.c.b16 %v158, %v157
    %v167 = vpack.c.b16 %v160, %v159
    %v168 = vpack.c.b16 %v162, %v161
    %v169 = vpack.c.b16 %v164, %v163
    %v173 = vunpack.c.l.b16 %v135
    %v174 = vunpack.c.l.b16 %v136
    %v175 = vunpack.c.l.b16 %v137
    %v176 = vpack.c.b16 %v174, %v173
    %v177 = vpack.c.b16 %v175, %v175
    %vm179 = vcmask 138240
    %v181 = vsel %vm179, %v165, 0
    %v184 = vsel %vm179, %v166, 0
    %v187 = vsel %vm179, %v167, 0
    %v190 = vsel %vm179, %v168, 0
    %v193 = vsel %vm179, %v169, 0
    %vm195 = vcmask 1040384
    %v196 = vsel 0, 4294967295, 65535
    %v197 = vsel %vm195, %v196, 0
    %v199 = vand.u32 %v177, %v197
    %201 = vmatprep.subr.bf16.mxu0 0
    %202 = vmatpush1.bf16.msra.mxu0 0
    %203 = vmatprep.subr.bf16.mxu0 0
    %204 = vmatpush1.bf16.msra.mxu0 0
    %205 = vmatprep.subr.bf16.mxu0 0
    %206 = vmatpush1.bf16.msra.mxu0 0
    %207 = vmatprep.subr.bf16.mxu0 0
    %208 = vmatpush1.bf16.msra.mxu0 0
    %209 = vmatprep.subr.bf16.mxu0 0
    %210 = vmatpush1.bf16.msra.mxu0 0
    %211 = vmatprep.subr.bf16.mxu0 0
    %212 = vmatpush1.bf16.msra.mxu0 0
    %213 = vmatprep.subr.bf16.mxu0 0
    %214 = vmatpush1.bf16.msra.mxu0 %v199
    %215 = vmatprep.subr.bf16.mxu0 0
    %216 = vmatpush1.bf16.msra.mxu0 %v176
    %217 = vmatprep.subr.bf16.mxu0 0
    %218 = vmatpush2.bf16.msra.mxu0 0
    %219 = vmatprep.subr.bf16.mxu0 0
    %220 = vmatpush2.bf16.msra.mxu0 0
    %221 = vmatprep.subr.bf16.mxu0 0
    %222 = vmatpush2.bf16.msra.mxu0 0
    %223 = vmatprep.subr.bf16.mxu0 0
    %224 = vmatpush2.bf16.msra.mxu0 0
    %225 = vmatprep.subr.bf16.mxu0 0
    %226 = vmatpush2.bf16.msra.mxu0 0
    %227 = vmatprep.subr.bf16.mxu0 0
    %228 = vmatpush2.bf16.msra.mxu0 0
    %229 = vmatprep.subr.bf16.mxu0 0
    %230 = vmatpush2.bf16.msra.mxu0 0
    %231 = vmatprep.subr.bf16.mxu0 0
    %232 = vmatpush2.bf16.msra.mxu0 0
    %233 = vmatprep.mubr.bf16.mxu0 0
    %234 = vmatmul.mubr.bf16.gmra.mxu0 %v181
    %v235 = vpop.f32.mrf.mxu0
    %v236 = vadd.f32 %v143, %v235
    %v237 = vpop.f32.mrf.mxu0
    %v238 = vpop.f32.mrf.mxu0
    %v239 = vadd.f32 %v143, %v238
    %v240 = vpop.f32.mrf.mxu0
    %241 = vmatprep.mubr.bf16.mxu0 0
    %242 = vmatmul.mubr.bf16.gmra.mxu0 %v184
    %v243 = vpop.f32.mrf.mxu0
    %v244 = vadd.f32 %v143, %v243
    %v245 = vpop.f32.mrf.mxu0
    %v246 = vpop.f32.mrf.mxu0
    %v247 = vadd.f32 %v143, %v246
    %v248 = vpop.f32.mrf.mxu0
    %249 = vmatprep.mubr.bf16.mxu0 0
    %250 = vmatmul.mubr.bf16.gmra.mxu0 %v187
    %v251 = vpop.f32.mrf.mxu0
    %v252 = vadd.f32 %v143, %v251
    %v253 = vpop.f32.mrf.mxu0
    %v254 = vpop.f32.mrf.mxu0
    %v255 = vadd.f32 %v143, %v254
    %v256 = vpop.f32.mrf.mxu0
    %257 = vmatprep.mubr.bf16.mxu0 0
    %258 = vmatmul.mubr.bf16.gmra.mxu0 %v190
    %v259 = vpop.f32.mrf.mxu0
    %v260 = vadd.f32 %v143, %v259
    %v261 = vpop.f32.mrf.mxu0
    %v262 = vpop.f32.mrf.mxu0
    %v263 = vadd.f32 %v143, %v262
    %v264 = vpop.f32.mrf.mxu0
    %265 = vmatprep.mubr.bf16.mxu0 0
    %266 = vmatmul.mubr.bf16.gmra.mxu0 %v193
    %v267 = vpop.f32.mrf.mxu0
    %v268 = vadd.f32 %v143, %v267
    %v269 = vpop.f32.mrf.mxu0
    %v270 = vpop.f32.mrf.mxu0
    %v271 = vadd.f32 %v143, %v270
    %v272 = vpop.f32.mrf.mxu0
    %273 = vdwg.mxu0
    %v274 = vld [vmem:[%s1] sm:$0xf]
    %v275 = vld [vmem:[%s1 + $0x4] sm:$0xf]
    %v276 = vld [vmem:[%s1 + $0x8] sm:$0xf]
    %v277 = vld [vmem:[%s1 + $0xc] sm:$0xf]
    %v278 = vld [vmem:[%s1 + $0x10] sm:$0xf]
    %v279 = vld [vmem:[%s1 + $0x14] sm:$0xf]
    %v280 = vld [vmem:[%s1 + $0x18] sm:$0xf]
    %v281 = vld [vmem:[%s1 + $0x1c] sm:$0xf]
    %v282 = vld [vmem:[%s1 + $0x20] sm:$0xf]
    %v283 = vld [vmem:[%s1 + $0x24] sm:$0xf]
    %v284 = vld [vmem:[%s7] sm:$0xf]
    %v285 = vld [vmem:[%s7 + $0x4] sm:$0x1]
    %v286 = vld [vmem:[%s8] sm:$0x1]
    %v288 = vlaneseq
    %v289 = vshrl.u32 %v288, 7
    %v290 = vsub.s32 0, %v289
    %v291 = vrot.slane %v286, %v290
    %v303 = vunpack.c.l.b16 %v274
    %v304 = vunpack.c.l.b16 %v275
    %v305 = vunpack.c.l.b16 %v276
    %v306 = vunpack.c.l.b16 %v277
    %v307 = vunpack.c.l.b16 %v278
    %v308 = vunpack.c.l.b16 %v279
    %v309 = vunpack.c.l.b16 %v280
    %v310 = vunpack.c.l.b16 %v281
    %v311 = vunpack.c.l.b16 %v282
    %v312 = vunpack.c.l.b16 %v283
    %v313 = vpack.c.b16 %v304, %v303
    %v314 = vpack.c.b16 %v306, %v305
    %v315 = vpack.c.b16 %v308, %v307
    %v316 = vpack.c.b16 %v310, %v309
    %v317 = vpack.c.b16 %v312, %v311
    %v320 = vunpack.c.l.b16 %v284
    %v321 = vunpack.c.l.b16 %v285
    %v322 = vpack.c.b16 %v321, %v320
    %vm323 = vcmask 72704
    %v325 = vsel %vm323, %v313, 0
    %v328 = vsel %vm323, %v314, 0
    %v331 = vsel %vm323, %v315, 0
    %v334 = vsel %vm323, %v316, 0
    %v337 = vsel %vm323, %v317, 0
    %vm339 = vcmask 1043456
    %vm340 = vcmask 1044480
    %v341 = vsel %vm339, 4294967295, 65535
    %v342 = vsel %vm340, %v341, 0
    %v344 = vand.u32 %v322, %v342
    %346 = vmatprep.subr.bf16.mxu0 0
    %347 = vmatpush1.bf16.msra.mxu0 0
    %348 = vmatprep.subr.bf16.mxu0 0
    %349 = vmatpush1.bf16.msra.mxu0 0
    %350 = vmatprep.subr.bf16.mxu0 0
    %351 = vmatpush1.bf16.msra.mxu0 0
    %352 = vmatprep.subr.bf16.mxu0 0
    %353 = vmatpush1.bf16.msra.mxu0 0
    %354 = vmatprep.subr.bf16.mxu0 0
    %355 = vmatpush1.bf16.msra.mxu0 0
    %356 = vmatprep.subr.bf16.mxu0 0
    %357 = vmatpush1.bf16.msra.mxu0 0
    %358 = vmatprep.subr.bf16.mxu0 0
    %359 = vmatpush1.bf16.msra.mxu0 0
    %360 = vmatprep.subr.bf16.mxu0 0
    %361 = vmatpush1.bf16.msra.mxu0 %v344
    %362 = vmatprep.subr.bf16.mxu0 0
    %363 = vmatpush2.bf16.msra.mxu0 0
    %364 = vmatprep.subr.bf16.mxu0 0
    %365 = vmatpush2.bf16.msra.mxu0 0
    %366 = vmatprep.subr.bf16.mxu0 0
    %367 = vmatpush2.bf16.msra.mxu0 0
    %368 = vmatprep.subr.bf16.mxu0 0
    %369 = vmatpush2.bf16.msra.mxu0 0
    %370 = vmatprep.subr.bf16.mxu0 0
    %371 = vmatpush2.bf16.msra.mxu0 0
    %372 = vmatprep.subr.bf16.mxu0 0
    %373 = vmatpush2.bf16.msra.mxu0 0
    %374 = vmatprep.subr.bf16.mxu0 0
    %375 = vmatpush2.bf16.msra.mxu0 0
    %376 = vmatprep.subr.bf16.mxu0 0
    %377 = vmatpush2.bf16.msra.mxu0 0
    %378 = vmatprep.mubr.bf16.mxu0 0
    %379 = vmatmul.mubr.bf16.gmra.mxu0 %v325
    %v380 = vpop.f32.mrf.mxu0
    %v381 = vadd.f32 %v291, %v380
    %v382 = vpop.f32.mrf.mxu0
    %v383 = vpop.f32.mrf.mxu0
    %v384 = vadd.f32 %v291, %v383
    %v385 = vpop.f32.mrf.mxu0
    %386 = vmatprep.mubr.bf16.mxu0 0
    %387 = vmatmul.mubr.bf16.gmra.mxu0 %v328
    %v388 = vpop.f32.mrf.mxu0
    %v389 = vadd.f32 %v291, %v388
    %v390 = vpop.f32.mrf.mxu0
    %v391 = vpop.f32.mrf.mxu0
    %v392 = vadd.f32 %v291, %v391
    %v393 = vpop.f32.mrf.mxu0
    %394 = vmatprep.mubr.bf16.mxu0 0
    %395 = vmatmul.mubr.bf16.gmra.mxu0 %v331
    %v396 = vpop.f32.mrf.mxu0
    %v397 = vadd.f32 %v291, %v396
    %v398 = vpop.f32.mrf.mxu0
    %v399 = vpop.f32.mrf.mxu0
    %v400 = vadd.f32 %v291, %v399
    %v401 = vpop.f32.mrf.mxu0
    %402 = vmatprep.mubr.bf16.mxu0 0
    %403 = vmatmul.mubr.bf16.gmra.mxu0 %v334
    %v404 = vpop.f32.mrf.mxu0
    %v405 = vadd.f32 %v291, %v404
    %v406 = vpop.f32.mrf.mxu0
    %v407 = vpop.f32.mrf.mxu0
    %v408 = vadd.f32 %v291, %v407
    %v409 = vpop.f32.mrf.mxu0
    %410 = vmatprep.mubr.bf16.mxu0 0
    %411 = vmatmul.mubr.bf16.gmra.mxu0 %v337
    %v412 = vpop.f32.mrf.mxu0
    %v413 = vadd.f32 %v291, %v412
    %v414 = vpop.f32.mrf.mxu0
    %v415 = vpop.f32.mrf.mxu0
    %v416 = vadd.f32 %v291, %v415
    %v417 = vpop.f32.mrf.mxu0
    %418 = vdwg.mxu0
    %v419 = vld [vmem:[%s9] sm:$0xf]
    %v420 = vld [vmem:[%s9 + $0x4] sm:$0xf]
    %v421 = vld [vmem:[%s9 + $0x8] sm:$0xf]
    %v422 = vld [vmem:[%s9 + $0xc] sm:$0xf]
    %v423 = vpack.c.bf16 %v239, %v236
    %v424 = vpack.c.bf16 %v247, %v244
    %v425 = vpack.c.bf16 %v255, %v252
    %v426 = vpack.c.bf16 %v263, %v260
    %v427 = vpack.c.bf16 %v271, %v268
    %v428 = vld [vmem:[%s10] sm:$0xf]
    %v429 = vld [vmem:[%s10 + $0x4] sm:$0xf]
    %v430 = vld [vmem:[%s10 + $0x8] sm:$0xf]
    %v431 = vld [vmem:[%s10 + $0xc] sm:$0xf]
    %v432 = vpack.c.bf16 %v384, %v381
    %v433 = vpack.c.bf16 %v392, %v389
    %v434 = vpack.c.bf16 %v400, %v397
    %v435 = vpack.c.bf16 %v408, %v405
    %v436 = vpack.c.bf16 %v416, %v413
    %v441 = vunpack.c.l.b16 %v428
    %v442 = vunpack.c.l.b16 %v429
    %v443 = vunpack.c.l.b16 %v430
    %v444 = vunpack.c.l.b16 %v431
    %v445 = vpack.c.b16 %v442, %v441
    %v446 = vpack.c.b16 %v444, %v443
    %vm449 = vcmask 261120
    %v451 = vsel %vm449, %v432, 0
    %v454 = vsel %vm449, %v433, 0
    %v457 = vsel %vm449, %v434, 0
    %v460 = vsel %vm449, %v435, 0
    %v463 = vsel %vm449, %v436, 0
    %465 = vmatprep.subr.bf16.mxu0 0
    %466 = vmatpush1.bf16.msra.mxu0 0
    %467 = vmatprep.subr.bf16.mxu0 0
    %468 = vmatpush1.bf16.msra.mxu0 0
    %469 = vmatprep.subr.bf16.mxu0 0
    %470 = vmatpush1.bf16.msra.mxu0 0
    %471 = vmatprep.subr.bf16.mxu0 0
    %472 = vmatpush1.bf16.msra.mxu0 0
    %473 = vmatprep.subr.bf16.mxu0 0
    %474 = vmatpush1.bf16.msra.mxu0 0
    %475 = vmatprep.subr.bf16.mxu0 0
    %476 = vmatpush1.bf16.msra.mxu0 0
    %477 = vmatprep.subr.bf16.mxu0 0
    %478 = vmatpush1.bf16.msra.mxu0 %v446
    %479 = vmatprep.subr.bf16.mxu0 0
    %480 = vmatpush1.bf16.msra.mxu0 %v445
    %481 = vmatprep.subr.bf16.mxu0 0
    %482 = vmatpush2.bf16.msra.mxu0 0
    %483 = vmatprep.subr.bf16.mxu0 0
    %484 = vmatpush2.bf16.msra.mxu0 0
    %485 = vmatprep.subr.bf16.mxu0 0
    %486 = vmatpush2.bf16.msra.mxu0 0
    %487 = vmatprep.subr.bf16.mxu0 0
    %488 = vmatpush2.bf16.msra.mxu0 0
    %489 = vmatprep.subr.bf16.mxu0 0
    %490 = vmatpush2.bf16.msra.mxu0 0
    %491 = vmatprep.subr.bf16.mxu0 0
    %492 = vmatpush2.bf16.msra.mxu0 0
    %493 = vmatprep.subr.bf16.mxu0 0
    %494 = vmatpush2.bf16.msra.mxu0 0
    %495 = vmatprep.subr.bf16.mxu0 0
    %496 = vmatpush2.bf16.msra.mxu0 0
    %497 = vmatprep.mubr.bf16.mxu0 0
    %498 = vmatmul.mubr.bf16.gmra.mxu0 %v451
    %v499 = vpop.f32.mrf.mxu0
    %v500 = vadd.f32 0.0, %v499
    %v501 = vpop.f32.mrf.mxu0
    %v502 = vpop.f32.mrf.mxu0
    %v503 = vadd.f32 0.0, %v502
    %v504 = vpop.f32.mrf.mxu0
    %505 = vmatprep.mubr.bf16.mxu0 0
    %506 = vmatmul.mubr.bf16.gmra.mxu0 %v454
    %v507 = vpop.f32.mrf.mxu0
    %v508 = vadd.f32 0.0, %v507
    %v509 = vpop.f32.mrf.mxu0
    %v510 = vpop.f32.mrf.mxu0
    %v511 = vadd.f32 0.0, %v510
    %v512 = vpop.f32.mrf.mxu0
    %513 = vmatprep.mubr.bf16.mxu0 0
    %514 = vmatmul.mubr.bf16.gmra.mxu0 %v457
    %v515 = vpop.f32.mrf.mxu0
    %v516 = vadd.f32 0.0, %v515
    %v517 = vpop.f32.mrf.mxu0
    %v518 = vpop.f32.mrf.mxu0
    %v519 = vadd.f32 0.0, %v518
    %v520 = vpop.f32.mrf.mxu0
    %521 = vmatprep.mubr.bf16.mxu0 0
    %522 = vmatmul.mubr.bf16.gmra.mxu0 %v460
    %v523 = vpop.f32.mrf.mxu0
    %v524 = vadd.f32 0.0, %v523
    %v525 = vpop.f32.mrf.mxu0
    %v526 = vpop.f32.mrf.mxu0
    %v527 = vadd.f32 0.0, %v526
    %v528 = vpop.f32.mrf.mxu0
    %529 = vmatprep.mubr.bf16.mxu0 0
    %530 = vmatmul.mubr.bf16.gmra.mxu0 %v463
    %v531 = vpop.f32.mrf.mxu0
    %v532 = vadd.f32 0.0, %v531
    %v533 = vpop.f32.mrf.mxu0
    %v534 = vpop.f32.mrf.mxu0
    %v535 = vadd.f32 0.0, %v534
    %v536 = vpop.f32.mrf.mxu0
    %537 = vdwg.mxu0
    %v542 = vunpack.c.l.b16 %v419
    %v543 = vunpack.c.l.b16 %v420
    %v544 = vunpack.c.l.b16 %v421
    %v545 = vunpack.c.l.b16 %v422
    %v546 = vpack.c.b16 %v543, %v542
    %v547 = vpack.c.b16 %v545, %v544
    %v551 = vsel %vm449, %v423, 0
    %v554 = vsel %vm449, %v424, 0
    %v557 = vsel %vm449, %v425, 0
    %v560 = vsel %vm449, %v426, 0
    %v563 = vsel %vm449, %v427, 0
    %565 = vmatprep.subr.bf16.mxu0 0
    %566 = vmatpush1.bf16.msra.mxu0 0
    %567 = vmatprep.subr.bf16.mxu0 0
    %568 = vmatpush1.bf16.msra.mxu0 0
    %569 = vmatprep.subr.bf16.mxu0 0
    %570 = vmatpush1.bf16.msra.mxu0 0
    %571 = vmatprep.subr.bf16.mxu0 0
    %572 = vmatpush1.bf16.msra.mxu0 0
    %573 = vmatprep.subr.bf16.mxu0 0
    %574 = vmatpush1.bf16.msra.mxu0 0
    %575 = vmatprep.subr.bf16.mxu0 0
    %576 = vmatpush1.bf16.msra.mxu0 0
    %577 = vmatprep.subr.bf16.mxu0 0
    %578 = vmatpush1.bf16.msra.mxu0 %v547
    %579 = vmatprep.subr.bf16.mxu0 0
    %580 = vmatpush1.bf16.msra.mxu0 %v546
    %581 = vmatprep.subr.bf16.mxu0 0
    %582 = vmatpush2.bf16.msra.mxu0 0
    %583 = vmatprep.subr.bf16.mxu0 0
    %584 = vmatpush2.bf16.msra.mxu0 0
    %585 = vmatprep.subr.bf16.mxu0 0
    %586 = vmatpush2.bf16.msra.mxu0 0
    %587 = vmatprep.subr.bf16.mxu0 0
    %588 = vmatpush2.bf16.msra.mxu0 0
    %589 = vmatprep.subr.bf16.mxu0 0
    %590 = vmatpush2.bf16.msra.mxu0 0
    %591 = vmatprep.subr.bf16.mxu0 0
    %592 = vmatpush2.bf16.msra.mxu0 0
    %593 = vmatprep.subr.bf16.mxu0 0
    %594 = vmatpush2.bf16.msra.mxu0 0
    %595 = vmatprep.subr.bf16.mxu0 0
    %596 = vmatpush2.bf16.msra.mxu0 0
    %597 = vmatprep.mubr.bf16.mxu0 0
    %598 = vmatmul.mubr.bf16.gmra.mxu0 %v551
    %v599 = vpop.f32.mrf.mxu0
    %v600 = vadd.f32 %v500, %v599
    %v601 = vpop.f32.mrf.mxu0
    %v602 = vpop.f32.mrf.mxu0
    %v603 = vadd.f32 %v503, %v602
    %v604 = vpop.f32.mrf.mxu0
    %605 = vmatprep.mubr.bf16.mxu0 0
    %606 = vmatmul.mubr.bf16.gmra.mxu0 %v554
    %v607 = vpop.f32.mrf.mxu0
    %v608 = vadd.f32 %v508, %v607
    %v609 = vpop.f32.mrf.mxu0
    %v610 = vpop.f32.mrf.mxu0
    %v611 = vadd.f32 %v511, %v610
    %v612 = vpop.f32.mrf.mxu0
    %613 = vmatprep.mubr.bf16.mxu0 0
    %614 = vmatmul.mubr.bf16.gmra.mxu0 %v557
    %v615 = vpop.f32.mrf.mxu0
    %v616 = vadd.f32 %v516, %v615
    %v617 = vpop.f32.mrf.mxu0
    %v618 = vpop.f32.mrf.mxu0
    %v619 = vadd.f32 %v519, %v618
    %v620 = vpop.f32.mrf.mxu0
    %621 = vmatprep.mubr.bf16.mxu0 0
    %622 = vmatmul.mubr.bf16.gmra.mxu0 %v560
    %v623 = vpop.f32.mrf.mxu0
    %v624 = vadd.f32 %v524, %v623
    %v625 = vpop.f32.mrf.mxu0
    %v626 = vpop.f32.mrf.mxu0
    %v627 = vadd.f32 %v527, %v626
    %v628 = vpop.f32.mrf.mxu0
    %629 = vmatprep.mubr.bf16.mxu0 0
    %630 = vmatmul.mubr.bf16.gmra.mxu0 %v563
    %v631 = vpop.f32.mrf.mxu0
    %v632 = vadd.f32 %v532, %v631
    %v633 = vpop.f32.mrf.mxu0
    %v634 = vpop.f32.mrf.mxu0
    %v635 = vadd.f32 %v535, %v634
    %v636 = vpop.f32.mrf.mxu0
    %637 = vdwg.mxu0
    %v638 = vld [vmem:[%s11] sm:$0x1]
    %v640 = vlaneseq
    %v641 = vshrl.u32 %v640, 7
    %v642 = vsub.s32 0, %v641
    %v643 = vrot.slane %v638, %v642
    %v645 = vadd.f32 %v600, %v643
    %v646 = vadd.f32 %v603, %v643
    %v647 = vadd.f32 %v608, %v643
    %v648 = vadd.f32 %v611, %v643
    %v649 = vadd.f32 %v616, %v643
    %v650 = vadd.f32 %v619, %v643
    %v651 = vadd.f32 %v624, %v643
    %v652 = vadd.f32 %v627, %v643
    %v653 = vadd.f32 %v632, %v643
    %v654 = vadd.f32 %v635, %v643
    %v655 = vmul.f32 %v645, 0.5
    %v656 = vmul.f32 %v646, 0.5
    %v657 = vmul.f32 %v647, 0.5
    %v658 = vmul.f32 %v648, 0.5
    %v659 = vmul.f32 %v649, 0.5
    %v660 = vmul.f32 %v650, 0.5
    %v661 = vmul.f32 %v651, 0.5
    %v662 = vmul.f32 %v652, 0.5
    %v663 = vmul.f32 %v653, 0.5
    %v664 = vmul.f32 %v654, 0.5
    %v665 = vmul.f32 %v655, 1.442695
    %v666 = vpow.pop %v665
    %v667 = vmul.f32 %v656, 1.442695
    %v668 = vpow.pop %v667
    %v669 = vmul.f32 %v657, 1.442695
    %v670 = vpow.pop %v669
    %v671 = vmul.f32 %v658, 1.442695
    %v672 = vpow.pop %v671
    %v673 = vmul.f32 %v659, 1.442695
    %v674 = vpow.pop %v673
    %v675 = vmul.f32 %v660, 1.442695
    %v676 = vpow.pop %v675
    %v677 = vmul.f32 %v661, 1.442695
    %v678 = vpow.pop %v677
    %v679 = vmul.f32 %v662, 1.442695
    %v680 = vpow.pop %v679
    %v681 = vmul.f32 %v663, 1.442695
    %v682 = vpow.pop %v681
    %v683 = vmul.f32 %v664, 1.442695
    %v684 = vpow.pop %v683
    %v685 = vld [vmem:[%s12] sm:$0xf]
    %v686 = vld [vmem:[%s12 + $0x4] sm:$0xf]
    %v687 = vld [vmem:[%s12 + $0x8] sm:$0xf]
    %v688 = vld [vmem:[%s12 + $0xc] sm:$0xf]
    %v689 = vld [vmem:[%s13] sm:$0x1]
    %v691 = vlaneseq
    %v692 = vshrl.u32 %v691, 7
    %v693 = vsub.s32 0, %v692
    %v694 = vrot.slane %v689, %v693
    %v700 = vunpack.c.l.b16 %v685
    %v701 = vunpack.c.l.b16 %v686
    %v702 = vunpack.c.l.b16 %v687
    %v703 = vunpack.c.l.b16 %v688
    %v704 = vpack.c.b16 %v701, %v700
    %v705 = vpack.c.b16 %v703, %v702
    %708 = vmatprep.subr.bf16.mxu0 0
    %709 = vmatpush1.bf16.msra.mxu0 0
    %710 = vmatprep.subr.bf16.mxu0 0
    %711 = vmatpush1.bf16.msra.mxu0 0
    %712 = vmatprep.subr.bf16.mxu0 0
    %713 = vmatpush1.bf16.msra.mxu0 0
    %714 = vmatprep.subr.bf16.mxu0 0
    %715 = vmatpush1.bf16.msra.mxu0 0
    %716 = vmatprep.subr.bf16.mxu0 0
    %717 = vmatpush1.bf16.msra.mxu0 0
    %718 = vmatprep.subr.bf16.mxu0 0
    %719 = vmatpush1.bf16.msra.mxu0 0
    %720 = vmatprep.subr.bf16.mxu0 0
    %721 = vmatpush1.bf16.msra.mxu0 %v705
    %722 = vmatprep.subr.bf16.mxu0 0
    %723 = vmatpush1.bf16.msra.mxu0 %v704
    %724 = vmatprep.subr.bf16.mxu0 0
    %725 = vmatpush2.bf16.msra.mxu0 0
    %726 = vmatprep.subr.bf16.mxu0 0
    %727 = vmatpush2.bf16.msra.mxu0 0
    %728 = vmatprep.subr.bf16.mxu0 0
    %729 = vmatpush2.bf16.msra.mxu0 0
    %730 = vmatprep.subr.bf16.mxu0 0
    %731 = vmatpush2.bf16.msra.mxu0 0
    %732 = vmatprep.subr.bf16.mxu0 0
    %733 = vmatpush2.bf16.msra.mxu0 0
    %734 = vmatprep.subr.bf16.mxu0 0
    %735 = vmatpush2.bf16.msra.mxu0 0
    %736 = vmatprep.subr.bf16.mxu0 0
    %737 = vmatpush2.bf16.msra.mxu0 0
    %738 = vmatprep.subr.bf16.mxu0 0
    %739 = vmatpush2.bf16.msra.mxu0 0
    %740 = vmatprep.mubr.bf16.mxu0 0
    %741 = vmatmul.mubr.bf16.gmra.mxu0 %v551
    %v742 = vpop.f32.mrf.mxu0
    %v743 = vadd.f32 %v694, %v742
    %v744 = vpop.f32.mrf.mxu0
    %v745 = vpop.f32.mrf.mxu0
    %v746 = vadd.f32 %v694, %v745
    %v747 = vpop.f32.mrf.mxu0
    %748 = vmatprep.mubr.bf16.mxu0 0
    %749 = vmatmul.mubr.bf16.gmra.mxu0 %v554
    %v750 = vpop.f32.mrf.mxu0
    %v751 = vadd.f32 %v694, %v750
    %v752 = vpop.f32.mrf.mxu0
    %v753 = vpop.f32.mrf.mxu0
    %v754 = vadd.f32 %v694, %v753
    %v755 = vpop.f32.mrf.mxu0
    %756 = vmatprep.mubr.bf16.mxu0 0
    %757 = vmatmul.mubr.bf16.gmra.mxu0 %v557
    %v758 = vpop.f32.mrf.mxu0
    %v759 = vadd.f32 %v694, %v758
    %v760 = vpop.f32.mrf.mxu0
    %v761 = vpop.f32.mrf.mxu0
    %v762 = vadd.f32 %v694, %v761
    %v763 = vpop.f32.mrf.mxu0
    %764 = vmatprep.mubr.bf16.mxu0 0
    %765 = vmatmul.mubr.bf16.gmra.mxu0 %v560
    %v766 = vpop.f32.mrf.mxu0
    %v767 = vadd.f32 %v694, %v766
    %v768 = vpop.f32.mrf.mxu0
    %v769 = vpop.f32.mrf.mxu0
    %v770 = vadd.f32 %v694, %v769
    %v771 = vpop.f32.mrf.mxu0
    %772 = vmatprep.mubr.bf16.mxu0 0
    %773 = vmatmul.mubr.bf16.gmra.mxu0 %v563
    %v774 = vpop.f32.mrf.mxu0
    %v775 = vadd.f32 %v694, %v774
    %v776 = vpop.f32.mrf.mxu0
    %v777 = vpop.f32.mrf.mxu0
    %v778 = vadd.f32 %v694, %v777
    %v779 = vpop.f32.mrf.mxu0
    %780 = vdwg.mxu0
    %v781 = vmul.f32 %v743, 0.5
    %v782 = vmul.f32 %v746, 0.5
    %v783 = vmul.f32 %v751, 0.5
    %v784 = vmul.f32 %v754, 0.5
    %v785 = vmul.f32 %v759, 0.5
    %v786 = vmul.f32 %v762, 0.5
    %v787 = vmul.f32 %v767, 0.5
    %v788 = vmul.f32 %v770, 0.5
    %v789 = vmul.f32 %v775, 0.5
    %v790 = vmul.f32 %v778, 0.5
    %v791 = vmul.f32 %v781, 1.442695
    %v792 = vpow.pop %v791
    %v793 = vmul.f32 %v782, 1.442695
    %v794 = vpow.pop %v793
    %v795 = vmul.f32 %v783, 1.442695
    %v796 = vpow.pop %v795
    %v797 = vmul.f32 %v784, 1.442695
    %v798 = vpow.pop %v797
    %v799 = vmul.f32 %v785, 1.442695
    %v800 = vpow.pop %v799
    %v801 = vmul.f32 %v786, 1.442695
    %v802 = vpow.pop %v801
    %v803 = vmul.f32 %v787, 1.442695
    %v804 = vpow.pop %v803
    %v805 = vmul.f32 %v788, 1.442695
    %v806 = vpow.pop %v805
    %v807 = vmul.f32 %v789, 1.442695
    %v808 = vpow.pop %v807
    %v809 = vmul.f32 %v790, 1.442695
    %v810 = vpow.pop %v809
    %v811 = vsub.f32 %v743, %v645
    %v812 = vsub.f32 %v746, %v646
    %v813 = vsub.f32 %v751, %v647
    %v814 = vsub.f32 %v754, %v648
    %v815 = vsub.f32 %v759, %v649
    %v816 = vsub.f32 %v762, %v650
    %v817 = vsub.f32 %v767, %v651
    %v818 = vsub.f32 %v770, %v652
    %v819 = vsub.f32 %v775, %v653
    %v820 = vsub.f32 %v778, %v654
    %v821 = vmul.f32 %v666, %v666
    %v822 = vmul.f32 %v668, %v668
    %v823 = vmul.f32 %v670, %v670
    %v824 = vmul.f32 %v672, %v672
    %v825 = vmul.f32 %v674, %v674
    %v826 = vmul.f32 %v676, %v676
    %v827 = vmul.f32 %v678, %v678
    %v828 = vmul.f32 %v680, %v680
    %v829 = vmul.f32 %v682, %v682
    %v830 = vmul.f32 %v684, %v684
    %v831 = vsub.f32 %v645, %v743
    %v832 = vsub.f32 %v646, %v746
    %v833 = vsub.f32 %v647, %v751
    %v834 = vsub.f32 %v648, %v754
    %v835 = vsub.f32 %v649, %v759
    %v836 = vsub.f32 %v650, %v762
    %v837 = vsub.f32 %v651, %v767
    %v838 = vsub.f32 %v652, %v770
    %v839 = vsub.f32 %v653, %v775
    %v840 = vsub.f32 %v654, %v778
    %v841 = vmul.f32 %v831, %v831
    %v842 = vmul.f32 %v832, %v832
    %v843 = vmul.f32 %v833, %v833
    %v844 = vmul.f32 %v834, %v834
    %v845 = vmul.f32 %v835, %v835
    %v846 = vmul.f32 %v836, %v836
    %v847 = vmul.f32 %v837, %v837
    %v848 = vmul.f32 %v838, %v838
    %v849 = vmul.f32 %v839, %v839
    %v850 = vmul.f32 %v840, %v840
    %861 = vrot.lane.b32.xlu0 %v841, 8
    %v862 = vpop.permute.xlu0 %861
    %863 = vrot.lane.b32.xlu0 %v842, 8
    %v864 = vpop.permute.xlu0 %863
    %865 = vrot.lane.b32.xlu0 %v843, 8
    %v866 = vpop.permute.xlu0 %865
    %867 = vrot.lane.b32.xlu0 %v844, 8
    %v868 = vpop.permute.xlu0 %867
    %869 = vrot.lane.b32.xlu0 %v845, 8
    %v870 = vpop.permute.xlu0 %869
    %871 = vrot.lane.b32.xlu0 %v846, 8
    %v872 = vpop.permute.xlu0 %871
    %873 = vrot.lane.b32.xlu0 %v847, 8
    %v874 = vpop.permute.xlu0 %873
    %875 = vrot.lane.b32.xlu0 %v848, 8
    %v876 = vpop.permute.xlu0 %875
    %877 = vrot.lane.b32.xlu0 %v849, 8
    %v878 = vpop.permute.xlu0 %877
    %879 = vrot.lane.b32.xlu0 %v850, 8
    %v880 = vpop.permute.xlu0 %879
    %v891 = vadd.f32 %v821, %v862
    %v892 = vadd.f32 %v822, %v864
    %v893 = vadd.f32 %v823, %v866
    %v894 = vadd.f32 %v824, %v868
    %v895 = vadd.f32 %v825, %v870
    %v896 = vadd.f32 %v826, %v872
    %v897 = vadd.f32 %v827, %v874
    %v898 = vadd.f32 %v828, %v876
    %v899 = vadd.f32 %v829, %v878
    %v900 = vadd.f32 %v830, %v880
    %v901 = vmul.f32 %v792, %v792
    %v902 = vmul.f32 %v794, %v794
    %v903 = vmul.f32 %v796, %v796
    %v904 = vmul.f32 %v798, %v798
    %v905 = vmul.f32 %v800, %v800
    %v906 = vmul.f32 %v802, %v802
    %v907 = vmul.f32 %v804, %v804
    %v908 = vmul.f32 %v806, %v806
    %v909 = vmul.f32 %v808, %v808
    %v910 = vmul.f32 %v810, %v810
    %v911 = vrcp.pop %v901
    %v912 = vmul.f32 %v891, %v911
    %v913 = vrcp.pop %v902
    %v914 = vmul.f32 %v892, %v913
    %v915 = vrcp.pop %v903
    %v916 = vmul.f32 %v893, %v915
    %v917 = vrcp.pop %v904
    %v918 = vmul.f32 %v894, %v917
    %v919 = vrcp.pop %v905
    %v920 = vmul.f32 %v895, %v919
    %v921 = vrcp.pop %v906
    %v922 = vmul.f32 %v896, %v921
    %v923 = vrcp.pop %v907
    %v924 = vmul.f32 %v897, %v923
    %v925 = vrcp.pop %v908
    %v926 = vmul.f32 %v898, %v925
    %v927 = vrcp.pop %v909
    %v928 = vmul.f32 %v899, %v927
    %v929 = vrcp.pop %v910
    %v930 = vmul.f32 %v900, %v929
    %v931 = vadd.f32 %v811, %v912
    %v932 = vadd.f32 %v812, %v914
    %v933 = vadd.f32 %v813, %v916
    %v934 = vadd.f32 %v814, %v918
    %v935 = vadd.f32 %v815, %v920
    %v936 = vadd.f32 %v816, %v922
    %v937 = vadd.f32 %v817, %v924
    %v938 = vadd.f32 %v818, %v926
    %v939 = vadd.f32 %v819, %v928
    %v940 = vadd.f32 %v820, %v930
    %v941 = vsub.f32 %v931, 1.0
    %v942 = vsub.f32 %v932, 1.0
    %v943 = vsub.f32 %v933, 1.0
    %v944 = vsub.f32 %v934, 1.0
    %v945 = vsub.f32 %v935, 1.0
    %v946 = vsub.f32 %v936, 1.0
    %v947 = vsub.f32 %v937, 1.0
    %v948 = vsub.f32 %v938, 1.0
    %v949 = vsub.f32 %v939, 1.0
    %v950 = vsub.f32 %v940, 1.0
    %v951 = vmul.f32 %v941, 0.5
    %v952 = vmul.f32 %v942, 0.5
    %v953 = vmul.f32 %v943, 0.5
    %v954 = vmul.f32 %v944, 0.5
    %v955 = vmul.f32 %v945, 0.5
    %v956 = vmul.f32 %v946, 0.5
    %v957 = vmul.f32 %v947, 0.5
    %v958 = vmul.f32 %v948, 0.5
    %v959 = vmul.f32 %v949, 0.5
    %v960 = vmul.f32 %v950, 0.5
    %v961 = vmul.f32 %v951, %v104
    %v962 = vmul.f32 %v952, %v105
    %v963 = vmul.f32 %v953, %v106
    %v964 = vmul.f32 %v954, %v107
    %v965 = vmul.f32 %v955, %v108
    %v966 = vmul.f32 %v956, %v109
    %v967 = vmul.f32 %v957, %v110
    %v968 = vmul.f32 %v958, %v111
    %v969 = vmul.f32 %v959, %v112
    %v970 = vmul.f32 %v960, %v113
    %981 = vrot.lane.b32.xlu0 %v961, 120
    %v982 = vpop.permute.xlu0 %981
    %983 = vrot.lane.b32.xlu0 %v962, 120
    %v984 = vpop.permute.xlu0 %983
    %985 = vrot.lane.b32.xlu0 %v963, 120
    %v986 = vpop.permute.xlu0 %985
    %987 = vrot.lane.b32.xlu0 %v964, 120
    %v988 = vpop.permute.xlu0 %987
    %989 = vrot.lane.b32.xlu0 %v965, 120
    %v990 = vpop.permute.xlu0 %989
    %991 = vrot.lane.b32.xlu0 %v966, 120
    %v992 = vpop.permute.xlu0 %991
    %993 = vrot.lane.b32.xlu0 %v967, 120
    %v994 = vpop.permute.xlu0 %993
    %995 = vrot.lane.b32.xlu0 %v968, 120
    %v996 = vpop.permute.xlu0 %995
    %997 = vrot.lane.b32.xlu0 %v969, 120
    %v998 = vpop.permute.xlu0 %997
    %999 = vrot.lane.b32.xlu0 %v970, 120
    %v1000 = vpop.permute.xlu0 %999
    %vm1011 = vcmask 64512
    %v1012 = vsel %vm1011, %v982, 0.0
    %v1013 = vsel %vm1011, %v984, 0.0
    %v1014 = vadd.f32 %v1012, %v1013
    %v1015 = vsel %vm1011, %v986, 0.0
    %v1016 = vadd.f32 %v1014, %v1015
    %v1017 = vsel %vm1011, %v988, 0.0
    %v1018 = vadd.f32 %v1016, %v1017
    %v1019 = vsel %vm1011, %v990, 0.0
    %v1020 = vadd.f32 %v1018, %v1019
    %v1021 = vsel %vm1011, %v992, 0.0
    %v1022 = vadd.f32 %v1020, %v1021
    %v1023 = vsel %vm1011, %v994, 0.0
    %v1024 = vadd.f32 %v1022, %v1023
    %v1025 = vsel %vm1011, %v996, 0.0
    %v1026 = vadd.f32 %v1024, %v1025
    %v1027 = vsel %vm1011, %v998, 0.0
    %v1028 = vadd.f32 %v1026, %v1027
    %v1029 = vsel %vm1011, %v1000, 0.0
    %v1030 = vadd.f32 %v1028, %v1029
    %1031 = vadd.xlane.f32.xlu0 %v1030
    %v1032 = vpop.xlane.xlu0 %1031
    %v1033 = vrot.slane %v1032, 4
    %v1034 = vadd.f32 %v1032, %v1033
    %v1035 = vrot.slane %v1034, 2
    %v1036 = vadd.f32 %v1034, %v1035
    %v1037 = vrot.slane %v1036, 1
    %v1038 = vadd.f32 %v1036, %v1037
    %s1039 = vtos %v1038
    %v1040 = vld [vmem:[%s3] sm:$0xf]
    %v1041 = vld [vmem:[%s3 + $0x4] sm:$0xf]
    %v1042 = vld [vmem:[%s3 + $0x8] sm:$0xf]
    %v1043 = vld [vmem:[%s3 + $0xc] sm:$0xf]
    %v1044 = vld [vmem:[%s3 + $0x10] sm:$0xf]
    %v1045 = vld [vmem:[%s3 + $0x14] sm:$0xf]
    %v1046 = vld [vmem:[%s3 + $0x18] sm:$0xf]
    %v1047 = vld [vmem:[%s3 + $0x1c] sm:$0xf]
    %v1048 = vld [vmem:[%s3 + $0x20] sm:$0xf]
    %v1049 = vld [vmem:[%s3 + $0x24] sm:$0xf]
    %v1050 = vunpack.c.l.bf16 %v1040
    %v1051 = vunpack.c.l.bf16 %v1041
    %v1052 = vunpack.c.l.bf16 %v1042
    %v1053 = vunpack.c.l.bf16 %v1043
    %v1054 = vunpack.c.l.bf16 %v1044
    %v1055 = vunpack.c.l.bf16 %v1045
    %v1056 = vunpack.c.l.bf16 %v1046
    %v1057 = vunpack.c.l.bf16 %v1047
    %v1058 = vunpack.c.l.bf16 %v1048
    %v1059 = vunpack.c.l.bf16 %v1049
    %1070 = vrot.lane.b32.xlu0 %v1050, 8
    %v1071 = vpop.permute.xlu0 %1070
    %1072 = vrot.lane.b32.xlu0 %v1051, 8
    %v1073 = vpop.permute.xlu0 %1072
    %1074 = vrot.lane.b32.xlu0 %v1052, 8
    %v1075 = vpop.permute.xlu0 %1074
    %1076 = vrot.lane.b32.xlu0 %v1053, 8
    %v1077 = vpop.permute.xlu0 %1076
    %1078 = vrot.lane.b32.xlu0 %v1054, 8
    %v1079 = vpop.permute.xlu0 %1078
    %1080 = vrot.lane.b32.xlu0 %v1055, 8
    %v1081 = vpop.permute.xlu0 %1080
    %1082 = vrot.lane.b32.xlu0 %v1056, 8
    %v1083 = vpop.permute.xlu0 %1082
    %1084 = vrot.lane.b32.xlu0 %v1057, 8
    %v1085 = vpop.permute.xlu0 %1084
    %1086 = vrot.lane.b32.xlu0 %v1058, 8
    %v1087 = vpop.permute.xlu0 %1086
    %1088 = vrot.lane.b32.xlu0 %v1059, 8
    %v1089 = vpop.permute.xlu0 %1088
    %v1100 = vmul.f32 %v666, %v1071
    %v1101 = vmul.f32 %v668, %v1073
    %v1102 = vmul.f32 %v670, %v1075
    %v1103 = vmul.f32 %v672, %v1077
    %v1104 = vmul.f32 %v674, %v1079
    %v1105 = vmul.f32 %v676, %v1081
    %v1106 = vmul.f32 %v678, %v1083
    %v1107 = vmul.f32 %v680, %v1085
    %v1108 = vmul.f32 %v682, %v1087
    %v1109 = vmul.f32 %v684, %v1089
    %1120 = vrot.lane.b32.xlu0 %v1100, 120
    %v1121 = vpop.permute.xlu0 %1120
    %1122 = vrot.lane.b32.xlu0 %v1101, 120
    %v1123 = vpop.permute.xlu0 %1122
    %1124 = vrot.lane.b32.xlu0 %v1102, 120
    %v1125 = vpop.permute.xlu0 %1124
    %1126 = vrot.lane.b32.xlu0 %v1103, 120
    %v1127 = vpop.permute.xlu0 %1126
    %1128 = vrot.lane.b32.xlu0 %v1104, 120
    %v1129 = vpop.permute.xlu0 %1128
    %1130 = vrot.lane.b32.xlu0 %v1105, 120
    %v1131 = vpop.permute.xlu0 %1130
    %1132 = vrot.lane.b32.xlu0 %v1106, 120
    %v1133 = vpop.permute.xlu0 %1132
    %1134 = vrot.lane.b32.xlu0 %v1107, 120
    %v1135 = vpop.permute.xlu0 %1134
    %1136 = vrot.lane.b32.xlu0 %v1108, 120
    %v1137 = vpop.permute.xlu0 %1136
    %1138 = vrot.lane.b32.xlu0 %v1109, 120
    %v1139 = vpop.permute.xlu0 %1138
    %v1150 = vadd.f32 %v645, %v1121
    %v1151 = vadd.f32 %v646, %v1123
    %v1152 = vadd.f32 %v647, %v1125
    %v1153 = vadd.f32 %v648, %v1127
    %v1154 = vadd.f32 %v649, %v1129
    %v1155 = vadd.f32 %v650, %v1131
    %v1156 = vadd.f32 %v651, %v1133
    %v1157 = vadd.f32 %v652, %v1135
    %v1158 = vadd.f32 %v653, %v1137
    %v1159 = vadd.f32 %v654, %v1139
    %v1160 = vld [vmem:[%s14] sm:$0xf]
    %v1161 = vld [vmem:[%s14 + $0x4] sm:$0xf]
    %v1162 = vld [vmem:[%s14 + $0x8] sm:$0xf]
    %v1163 = vld [vmem:[%s14 + $0xc] sm:$0xf]
    %v1164 = vld [vmem:[%s17] sm:$0x1]
    %v1166 = vlaneseq
    %v1167 = vshrl.u32 %v1166, 7
    %v1168 = vsub.s32 0, %v1167
    %v1169 = vrot.slane %v1164, %v1168
    %v1175 = vunpack.c.l.b16 %v1160
    %v1176 = vunpack.c.l.b16 %v1161
    %v1177 = vunpack.c.l.b16 %v1162
    %v1178 = vunpack.c.l.b16 %v1163
    %v1179 = vpack.c.b16 %v1176, %v1175
    %v1180 = vpack.c.b16 %v1178, %v1177
    %1183 = vmatprep.subr.bf16.mxu0 0
    %1184 = vmatpush1.bf16.msra.mxu0 0
    %1185 = vmatprep.subr.bf16.mxu0 0
    %1186 = vmatpush1.bf16.msra.mxu0 0
    %1187 = vmatprep.subr.bf16.mxu0 0
    %1188 = vmatpush1.bf16.msra.mxu0 0
    %1189 = vmatprep.subr.bf16.mxu0 0
    %1190 = vmatpush1.bf16.msra.mxu0 0
    %1191 = vmatprep.subr.bf16.mxu0 0
    %1192 = vmatpush1.bf16.msra.mxu0 0
    %1193 = vmatprep.subr.bf16.mxu0 0
    %1194 = vmatpush1.bf16.msra.mxu0 0
    %1195 = vmatprep.subr.bf16.mxu0 0
    %1196 = vmatpush1.bf16.msra.mxu0 %v1180
    %1197 = vmatprep.subr.bf16.mxu0 0
    %1198 = vmatpush1.bf16.msra.mxu0 %v1179
    %1199 = vmatprep.subr.bf16.mxu0 0
    %1200 = vmatpush2.bf16.msra.mxu0 0
    %1201 = vmatprep.subr.bf16.mxu0 0
    %1202 = vmatpush2.bf16.msra.mxu0 0
    %1203 = vmatprep.subr.bf16.mxu0 0
    %1204 = vmatpush2.bf16.msra.mxu0 0
    %1205 = vmatprep.subr.bf16.mxu0 0
    %1206 = vmatpush2.bf16.msra.mxu0 0
    %1207 = vmatprep.subr.bf16.mxu0 0
    %1208 = vmatpush2.bf16.msra.mxu0 0
    %1209 = vmatprep.subr.bf16.mxu0 0
    %1210 = vmatpush2.bf16.msra.mxu0 0
    %1211 = vmatprep.subr.bf16.mxu0 0
    %1212 = vmatpush2.bf16.msra.mxu0 0
    %1213 = vmatprep.subr.bf16.mxu0 0
    %1214 = vmatpush2.bf16.msra.mxu0 0
    %1215 = vmatprep.mubr.bf16.mxu0 0
    %1216 = vmatmul.mubr.bf16.gmra.mxu0 %v551
    %v1217 = vpop.f32.mrf.mxu0
    %v1218 = vadd.f32 %v1169, %v1217
    %v1219 = vpop.f32.mrf.mxu0
    %v1220 = vpop.f32.mrf.mxu0
    %v1221 = vadd.f32 %v1169, %v1220
    %v1222 = vpop.f32.mrf.mxu0
    %1223 = vmatprep.mubr.bf16.mxu0 0
    %1224 = vmatmul.mubr.bf16.gmra.mxu0 %v554
    %v1225 = vpop.f32.mrf.mxu0
    %v1226 = vadd.f32 %v1169, %v1225
    %v1227 = vpop.f32.mrf.mxu0
    %v1228 = vpop.f32.mrf.mxu0
    %v1229 = vadd.f32 %v1169, %v1228
    %v1230 = vpop.f32.mrf.mxu0
    %1231 = vmatprep.mubr.bf16.mxu0 0
    %1232 = vmatmul.mubr.bf16.gmra.mxu0 %v557
    %v1233 = vpop.f32.mrf.mxu0
    %v1234 = vadd.f32 %v1169, %v1233
    %v1235 = vpop.f32.mrf.mxu0
    %v1236 = vpop.f32.mrf.mxu0
    %v1237 = vadd.f32 %v1169, %v1236
    %v1238 = vpop.f32.mrf.mxu0
    %1239 = vmatprep.mubr.bf16.mxu0 0
    %1240 = vmatmul.mubr.bf16.gmra.mxu0 %v560
    %v1241 = vpop.f32.mrf.mxu0
    %v1242 = vadd.f32 %v1169, %v1241
    %v1243 = vpop.f32.mrf.mxu0
    %v1244 = vpop.f32.mrf.mxu0
    %v1245 = vadd.f32 %v1169, %v1244
    %v1246 = vpop.f32.mrf.mxu0
    %1247 = vmatprep.mubr.bf16.mxu0 0
    %1248 = vmatmul.mubr.bf16.gmra.mxu0 %v563
    %v1249 = vpop.f32.mrf.mxu0
    %v1250 = vadd.f32 %v1169, %v1249
    %v1251 = vpop.f32.mrf.mxu0
    %v1252 = vpop.f32.mrf.mxu0
    %v1253 = vadd.f32 %v1169, %v1252
    %v1254 = vpop.f32.mrf.mxu0
    %1255 = vdwg.mxu0
    %v1256 = vpack.c.bf16 %v1151, %v1150
    %v1257 = vpack.c.bf16 %v1153, %v1152
    %v1258 = vpack.c.bf16 %v1155, %v1154
    %v1259 = vpack.c.bf16 %v1157, %v1156
    %v1260 = vpack.c.bf16 %v1159, %v1158
    %v1262 = vsel %vm1011, %v1256, 0
    %v1265 = vsel %vm1011, %v1257, 0
    %v1268 = vsel %vm1011, %v1258, 0
    %v1271 = vsel %vm1011, %v1259, 0
    %v1274 = vsel %vm1011, %v1260, 0
    %v1277 = vsel %vm339, %v124, 0
    %1279 = vmatprep.subr.bf16.mxu0 0
    %1280 = vmatpush1.bf16.msra.mxu0 0
    %1281 = vmatprep.subr.bf16.mxu0 0
    %1282 = vmatpush1.bf16.msra.mxu0 0
    %1283 = vmatprep.subr.bf16.mxu0 0
    %1284 = vmatpush1.bf16.msra.mxu0 0
    %1285 = vmatprep.subr.bf16.mxu0 0
    %1286 = vmatpush1.bf16.msra.mxu0 0
    %1287 = vmatprep.subr.bf16.mxu0 0
    %1288 = vmatpush1.bf16.msra.mxu0 0
    %1289 = vmatprep.subr.bf16.mxu0 0
    %1290 = vmatpush1.bf16.msra.mxu0 0
    %1291 = vmatprep.subr.bf16.mxu0 0
    %1292 = vmatpush1.bf16.msra.mxu0 0
    %1293 = vmatprep.subr.bf16.mxu0 0
    %1294 = vmatpush1.bf16.msra.mxu0 %v1277
    %1295 = vmatprep.subr.bf16.mxu0 0
    %1296 = vmatpush2.bf16.msra.mxu0 0
    %1297 = vmatprep.subr.bf16.mxu0 0
    %1298 = vmatpush2.bf16.msra.mxu0 0
    %1299 = vmatprep.subr.bf16.mxu0 0
    %1300 = vmatpush2.bf16.msra.mxu0 0
    %1301 = vmatprep.subr.bf16.mxu0 0
    %1302 = vmatpush2.bf16.msra.mxu0 0
    %1303 = vmatprep.subr.bf16.mxu0 0
    %1304 = vmatpush2.bf16.msra.mxu0 0
    %1305 = vmatprep.subr.bf16.mxu0 0
    %1306 = vmatpush2.bf16.msra.mxu0 0
    %1307 = vmatprep.subr.bf16.mxu0 0
    %1308 = vmatpush2.bf16.msra.mxu0 0
    %1309 = vmatprep.subr.bf16.mxu0 0
    %1310 = vmatpush2.bf16.msra.mxu0 0
    %1311 = vmatprep.mubr.bf16.mxu0 0
    %1312 = vmatmul.mubr.bf16.gmra.mxu0 %v1262
    %v1313 = vpop.f32.mrf.mxu0
    %v1314 = vadd.f32 0.0, %v1313
    %v1315 = vpop.f32.mrf.mxu0
    %v1316 = vpop.f32.mrf.mxu0
    %v1317 = vadd.f32 0.0, %v1316
    %v1318 = vpop.f32.mrf.mxu0
    %1319 = vmatprep.mubr.bf16.mxu0 0
    %1320 = vmatmul.mubr.bf16.gmra.mxu0 %v1265
    %v1321 = vpop.f32.mrf.mxu0
    %v1322 = vadd.f32 0.0, %v1321
    %v1323 = vpop.f32.mrf.mxu0
    %v1324 = vpop.f32.mrf.mxu0
    %v1325 = vadd.f32 0.0, %v1324
    %v1326 = vpop.f32.mrf.mxu0
    %1327 = vmatprep.mubr.bf16.mxu0 0
    %1328 = vmatmul.mubr.bf16.gmra.mxu0 %v1268
    %v1329 = vpop.f32.mrf.mxu0
    %v1330 = vadd.f32 0.0, %v1329
    %v1331 = vpop.f32.mrf.mxu0
    %v1332 = vpop.f32.mrf.mxu0
    %v1333 = vadd.f32 0.0, %v1332
    %v1334 = vpop.f32.mrf.mxu0
    %1335 = vmatprep.mubr.bf16.mxu0 0
    %1336 = vmatmul.mubr.bf16.gmra.mxu0 %v1271
    %v1337 = vpop.f32.mrf.mxu0
    %v1338 = vadd.f32 0.0, %v1337
    %v1339 = vpop.f32.mrf.mxu0
    %v1340 = vpop.f32.mrf.mxu0
    %v1341 = vadd.f32 0.0, %v1340
    %v1342 = vpop.f32.mrf.mxu0
    %1343 = vmatprep.mubr.bf16.mxu0 0
    %1344 = vmatmul.mubr.bf16.gmra.mxu0 %v1274
    %v1345 = vpop.f32.mrf.mxu0
    %v1346 = vadd.f32 0.0, %v1345
    %v1347 = vpop.f32.mrf.mxu0
    %v1348 = vpop.f32.mrf.mxu0
    %v1349 = vadd.f32 0.0, %v1348
    %v1350 = vpop.f32.mrf.mxu0
    %1351 = vdwg.mxu0
    %v1352 = vadd.f32 %v1218, %v1314
    %v1353 = vadd.f32 %v1221, %v1317
    %v1354 = vadd.f32 %v1226, %v1322
    %v1355 = vadd.f32 %v1229, %v1325
    %v1356 = vadd.f32 %v1234, %v1330
    %v1357 = vadd.f32 %v1237, %v1333
    %v1358 = vadd.f32 %v1242, %v1338
    %v1359 = vadd.f32 %v1245, %v1341
    %v1360 = vadd.f32 %v1250, %v1346
    %v1361 = vadd.f32 %v1253, %v1349
    %v1362 = vsub.f32 %v1352, %v114
    %v1363 = vsub.f32 %v1353, %v115
    %v1364 = vsub.f32 %v1354, %v116
    %v1365 = vsub.f32 %v1355, %v117
    %v1366 = vsub.f32 %v1356, %v118
    %v1367 = vsub.f32 %v1357, %v119
    %v1368 = vsub.f32 %v1358, %v120
    %v1369 = vsub.f32 %v1359, %v121
    %v1370 = vsub.f32 %v1360, %v122
    %v1371 = vsub.f32 %v1361, %v123
    %v1372 = vmul.f32 %v1362, %v104
    %v1373 = vmul.f32 %v1363, %v105
    %v1374 = vmul.f32 %v1364, %v106
    %v1375 = vmul.f32 %v1365, %v107
    %v1376 = vmul.f32 %v1366, %v108
    %v1377 = vmul.f32 %v1367, %v109
    %v1378 = vmul.f32 %v1368, %v110
    %v1379 = vmul.f32 %v1369, %v111
    %v1380 = vmul.f32 %v1370, %v112
    %v1381 = vmul.f32 %v1371, %v113
    %v1382 = vmul.f32 %v1372, %v1372
    %v1383 = vmul.f32 %v1373, %v1373
    %v1384 = vmul.f32 %v1374, %v1374
    %v1385 = vmul.f32 %v1375, %v1375
    %v1386 = vmul.f32 %v1376, %v1376
    %v1387 = vmul.f32 %v1377, %v1377
    %v1388 = vmul.f32 %v1378, %v1378
    %v1389 = vmul.f32 %v1379, %v1379
    %v1390 = vmul.f32 %v1380, %v1380
    %v1391 = vmul.f32 %v1381, %v1381
    %vm1392 = vcmask 15360
    %v1393 = vsel %vm1392, %v1382, 0.0
    %v1394 = vsel %vm1392, %v1383, 0.0
    %v1395 = vadd.f32 %v1393, %v1394
    %v1396 = vsel %vm1392, %v1384, 0.0
    %v1397 = vadd.f32 %v1395, %v1396
    %v1398 = vsel %vm1392, %v1385, 0.0
    %v1399 = vadd.f32 %v1397, %v1398
    %v1400 = vsel %vm1392, %v1386, 0.0
    %v1401 = vadd.f32 %v1399, %v1400
    %v1402 = vsel %vm1392, %v1387, 0.0
    %v1403 = vadd.f32 %v1401, %v1402
    %v1404 = vsel %vm1392, %v1388, 0.0
    %v1405 = vadd.f32 %v1403, %v1404
    %v1406 = vsel %vm1392, %v1389, 0.0
    %v1407 = vadd.f32 %v1405, %v1406
    %v1408 = vsel %vm1392, %v1390, 0.0
    %v1409 = vadd.f32 %v1407, %v1408
    %v1410 = vsel %vm1392, %v1391, 0.0
    %v1411 = vadd.f32 %v1409, %v1410
    %1412 = vadd.xlane.f32.xlu0 %v1411
    %v1413 = vpop.xlane.xlu0 %1412
    %v1414 = vrot.slane %v1413, 4
    %v1415 = vadd.f32 %v1413, %v1414
    %v1416 = vrot.slane %v1415, 2
    %v1417 = vadd.f32 %v1415, %v1416
    %v1418 = vrot.slane %v1417, 1
    %v1419 = vadd.f32 %v1417, %v1418
    %s1420 = vtos %v1419
    %v1421 = vpack.c.bf16 %v746, %v743
    %v1422 = vpack.c.bf16 %v754, %v751
    %v1423 = vpack.c.bf16 %v762, %v759
    %v1424 = vpack.c.bf16 %v770, %v767
    %v1425 = vpack.c.bf16 %v778, %v775
    %v1427 = vsel %vm1011, %v1421, 0
    %v1430 = vsel %vm1011, %v1422, 0
    %v1433 = vsel %vm1011, %v1423, 0
    %v1436 = vsel %vm1011, %v1424, 0
    %v1439 = vsel %vm1011, %v1425, 0
    %1441 = vmatprep.subr.bf16.mxu0 0
    %1442 = vmatpush1.bf16.msra.mxu0 0
    %1443 = vmatprep.subr.bf16.mxu0 0
    %1444 = vmatpush1.bf16.msra.mxu0 0
    %1445 = vmatprep.subr.bf16.mxu0 0
    %1446 = vmatpush1.bf16.msra.mxu0 0
    %1447 = vmatprep.subr.bf16.mxu0 0
    %1448 = vmatpush1.bf16.msra.mxu0 0
    %1449 = vmatprep.subr.bf16.mxu0 0
    %1450 = vmatpush1.bf16.msra.mxu0 0
    %1451 = vmatprep.subr.bf16.mxu0 0
    %1452 = vmatpush1.bf16.msra.mxu0 0
    %1453 = vmatprep.subr.bf16.mxu0 0
    %1454 = vmatpush1.bf16.msra.mxu0 0
    %1455 = vmatprep.subr.bf16.mxu0 0
    %1456 = vmatpush1.bf16.msra.mxu0 %v1277
    %1457 = vmatprep.subr.bf16.mxu0 0
    %1458 = vmatpush2.bf16.msra.mxu0 0
    %1459 = vmatprep.subr.bf16.mxu0 0
    %1460 = vmatpush2.bf16.msra.mxu0 0
    %1461 = vmatprep.subr.bf16.mxu0 0
    %1462 = vmatpush2.bf16.msra.mxu0 0
    %1463 = vmatprep.subr.bf16.mxu0 0
    %1464 = vmatpush2.bf16.msra.mxu0 0
    %1465 = vmatprep.subr.bf16.mxu0 0
    %1466 = vmatpush2.bf16.msra.mxu0 0
    %1467 = vmatprep.subr.bf16.mxu0 0
    %1468 = vmatpush2.bf16.msra.mxu0 0
    %1469 = vmatprep.subr.bf16.mxu0 0
    %1470 = vmatpush2.bf16.msra.mxu0 0
    %1471 = vmatprep.subr.bf16.mxu0 0
    %1472 = vmatpush2.bf16.msra.mxu0 0
    %1473 = vmatprep.mubr.bf16.mxu0 0
    %1474 = vmatmul.mubr.bf16.gmra.mxu0 %v1427
    %v1475 = vpop.f32.mrf.mxu0
    %v1476 = vadd.f32 0.0, %v1475
    %v1477 = vpop.f32.mrf.mxu0
    %v1478 = vpop.f32.mrf.mxu0
    %v1479 = vadd.f32 0.0, %v1478
    %v1480 = vpop.f32.mrf.mxu0
    %1481 = vmatprep.mubr.bf16.mxu0 0
    %1482 = vmatmul.mubr.bf16.gmra.mxu0 %v1430
    %v1483 = vpop.f32.mrf.mxu0
    %v1484 = vadd.f32 0.0, %v1483
    %v1485 = vpop.f32.mrf.mxu0
    %v1486 = vpop.f32.mrf.mxu0
    %v1487 = vadd.f32 0.0, %v1486
    %v1488 = vpop.f32.mrf.mxu0
    %1489 = vmatprep.mubr.bf16.mxu0 0
    %1490 = vmatmul.mubr.bf16.gmra.mxu0 %v1433
    %v1491 = vpop.f32.mrf.mxu0
    %v1492 = vadd.f32 0.0, %v1491
    %v1493 = vpop.f32.mrf.mxu0
    %v1494 = vpop.f32.mrf.mxu0
    %v1495 = vadd.f32 0.0, %v1494
    %v1496 = vpop.f32.mrf.mxu0
    %1497 = vmatprep.mubr.bf16.mxu0 0
    %1498 = vmatmul.mubr.bf16.gmra.mxu0 %v1436
    %v1499 = vpop.f32.mrf.mxu0
    %v1500 = vadd.f32 0.0, %v1499
    %v1501 = vpop.f32.mrf.mxu0
    %v1502 = vpop.f32.mrf.mxu0
    %v1503 = vadd.f32 0.0, %v1502
    %v1504 = vpop.f32.mrf.mxu0
    %1505 = vmatprep.mubr.bf16.mxu0 0
    %1506 = vmatmul.mubr.bf16.gmra.mxu0 %v1439
    %v1507 = vpop.f32.mrf.mxu0
    %v1508 = vadd.f32 0.0, %v1507
    %v1509 = vpop.f32.mrf.mxu0
    %v1510 = vpop.f32.mrf.mxu0
    %v1511 = vadd.f32 0.0, %v1510
    %v1512 = vpop.f32.mrf.mxu0
    %1513 = vdwg.mxu0
    %v1514 = vadd.f32 %v1218, %v1476
    %v1515 = vadd.f32 %v1221, %v1479
    %v1516 = vadd.f32 %v1226, %v1484
    %v1517 = vadd.f32 %v1229, %v1487
    %v1518 = vadd.f32 %v1234, %v1492
    %v1519 = vadd.f32 %v1237, %v1495
    %v1520 = vadd.f32 %v1242, %v1500
    %v1521 = vadd.f32 %v1245, %v1503
    %v1522 = vadd.f32 %v1250, %v1508
    %v1523 = vadd.f32 %v1253, %v1511
    %v1524 = vsub.f32 %v1514, %v114
    %v1525 = vsub.f32 %v1515, %v115
    %v1526 = vsub.f32 %v1516, %v116
    %v1527 = vsub.f32 %v1517, %v117
    %v1528 = vsub.f32 %v1518, %v118
    %v1529 = vsub.f32 %v1519, %v119
    %v1530 = vsub.f32 %v1520, %v120
    %v1531 = vsub.f32 %v1521, %v121
    %v1532 = vsub.f32 %v1522, %v122
    %v1533 = vsub.f32 %v1523, %v123
    %1544 = vrot.lane.b32.xlu0 %v792, 120
    %v1545 = vpop.permute.xlu0 %1544
    %1546 = vrot.lane.b32.xlu0 %v794, 120
    %v1547 = vpop.permute.xlu0 %1546
    %1548 = vrot.lane.b32.xlu0 %v796, 120
    %v1549 = vpop.permute.xlu0 %1548
    %1550 = vrot.lane.b32.xlu0 %v798, 120
    %v1551 = vpop.permute.xlu0 %1550
    %1552 = vrot.lane.b32.xlu0 %v800, 120
    %v1553 = vpop.permute.xlu0 %1552
    %1554 = vrot.lane.b32.xlu0 %v802, 120
    %v1555 = vpop.permute.xlu0 %1554
    %1556 = vrot.lane.b32.xlu0 %v804, 120
    %v1557 = vpop.permute.xlu0 %1556
    %1558 = vrot.lane.b32.xlu0 %v806, 120
    %v1559 = vpop.permute.xlu0 %1558
    %1560 = vrot.lane.b32.xlu0 %v808, 120
    %v1561 = vpop.permute.xlu0 %1560
    %1562 = vrot.lane.b32.xlu0 %v810, 120
    %v1563 = vpop.permute.xlu0 %1562
    %1574 = vrot.lane.b32.xlu0 %v792, 8
    %v1575 = vpop.permute.xlu0 %1574
    %1576 = vrot.lane.b32.xlu0 %v794, 8
    %v1577 = vpop.permute.xlu0 %1576
    %1578 = vrot.lane.b32.xlu0 %v796, 8
    %v1579 = vpop.permute.xlu0 %1578
    %1580 = vrot.lane.b32.xlu0 %v798, 8
    %v1581 = vpop.permute.xlu0 %1580
    %1582 = vrot.lane.b32.xlu0 %v800, 8
    %v1583 = vpop.permute.xlu0 %1582
    %1584 = vrot.lane.b32.xlu0 %v802, 8
    %v1585 = vpop.permute.xlu0 %1584
    %1586 = vrot.lane.b32.xlu0 %v804, 8
    %v1587 = vpop.permute.xlu0 %1586
    %1588 = vrot.lane.b32.xlu0 %v806, 8
    %v1589 = vpop.permute.xlu0 %1588
    %1590 = vrot.lane.b32.xlu0 %v808, 8
    %v1591 = vpop.permute.xlu0 %1590
    %1592 = vrot.lane.b32.xlu0 %v810, 8
    %v1593 = vpop.permute.xlu0 %1592
    %1604 = vrot.lane.b32.xlu0 %v792, 16
    %v1605 = vpop.permute.xlu0 %1604
    %1606 = vrot.lane.b32.xlu0 %v794, 16
    %v1607 = vpop.permute.xlu0 %1606
    %1608 = vrot.lane.b32.xlu0 %v796, 16
    %v1609 = vpop.permute.xlu0 %1608
    %1610 = vrot.lane.b32.xlu0 %v798, 16
    %v1611 = vpop.permute.xlu0 %1610
    %1612 = vrot.lane.b32.xlu0 %v800, 16
    %v1613 = vpop.permute.xlu0 %1612
    %1614 = vrot.lane.b32.xlu0 %v802, 16
    %v1615 = vpop.permute.xlu0 %1614
    %1616 = vrot.lane.b32.xlu0 %v804, 16
    %v1617 = vpop.permute.xlu0 %1616
    %1618 = vrot.lane.b32.xlu0 %v806, 16
    %v1619 = vpop.permute.xlu0 %1618
    %1620 = vrot.lane.b32.xlu0 %v808, 16
    %v1621 = vpop.permute.xlu0 %1620
    %1622 = vrot.lane.b32.xlu0 %v810, 16
    %v1623 = vpop.permute.xlu0 %1622
    %1634 = vrot.lane.b32.xlu0 %v792, 24
    %v1635 = vpop.permute.xlu0 %1634
    %1636 = vrot.lane.b32.xlu0 %v794, 24
    %v1637 = vpop.permute.xlu0 %1636
    %1638 = vrot.lane.b32.xlu0 %v796, 24
    %v1639 = vpop.permute.xlu0 %1638
    %1640 = vrot.lane.b32.xlu0 %v798, 24
    %v1641 = vpop.permute.xlu0 %1640
    %1642 = vrot.lane.b32.xlu0 %v800, 24
    %v1643 = vpop.permute.xlu0 %1642
    %1644 = vrot.lane.b32.xlu0 %v802, 24
    %v1645 = vpop.permute.xlu0 %1644
    %1646 = vrot.lane.b32.xlu0 %v804, 24
    %v1647 = vpop.permute.xlu0 %1646
    %1648 = vrot.lane.b32.xlu0 %v806, 24
    %v1649 = vpop.permute.xlu0 %1648
    %1650 = vrot.lane.b32.xlu0 %v808, 24
    %v1651 = vpop.permute.xlu0 %1650
    %1652 = vrot.lane.b32.xlu0 %v810, 24
    %v1653 = vpop.permute.xlu0 %1652
    %v1664 = vsel %vm1011, %v1545, %v792
    %v1665 = vsel %vm1011, %v1547, %v794
    %v1666 = vsel %vm1011, %v1549, %v796
    %v1667 = vsel %vm1011, %v1551, %v798
    %v1668 = vsel %vm1011, %v1553, %v800
    %v1669 = vsel %vm1011, %v1555, %v802
    %v1670 = vsel %vm1011, %v1557, %v804
    %v1671 = vsel %vm1011, %v1559, %v806
    %v1672 = vsel %vm1011, %v1561, %v808
    %v1673 = vsel %vm1011, %v1563, %v810
    %vm1674 = vcmask 130048
    %v1675 = vsel %vm1674, %v1664, %v1575
    %v1676 = vsel %vm1674, %v1665, %v1577
    %v1677 = vsel %vm1674, %v1666, %v1579
    %v1678 = vsel %vm1674, %v1667, %v1581
    %v1679 = vsel %vm1674, %v1668, %v1583
    %v1680 = vsel %vm1674, %v1669, %v1585
    %v1681 = vsel %vm1674, %v1670, %v1587
    %v1682 = vsel %vm1674, %v1671, %v1589
    %v1683 = vsel %vm1674, %v1672, %v1591
    %v1684 = vsel %vm1674, %v1673, %v1593
    %vm1685 = vcmask 195584
    %v1686 = vsel %vm1685, %v1675, %v1605
    %v1687 = vsel %vm1685, %v1676, %v1607
    %v1688 = vsel %vm1685, %v1677, %v1609
    %v1689 = vsel %vm1685, %v1678, %v1611
    %v1690 = vsel %vm1685, %v1679, %v1613
    %v1691 = vsel %vm1685, %v1680, %v1615
    %v1692 = vsel %vm1685, %v1681, %v1617
    %v1693 = vsel %vm1685, %v1682, %v1619
    %v1694 = vsel %vm1685, %v1683, %v1621
    %v1695 = vsel %vm1685, %v1684, %v1623
    %v1696 = vsel %vm449, %v1686, %v1635
    %v1697 = vsel %vm449, %v1687, %v1637
    %v1698 = vsel %vm449, %v1688, %v1639
    %v1699 = vsel %vm449, %v1689, %v1641
    %v1700 = vsel %vm449, %v1690, %v1643
    %v1701 = vsel %vm449, %v1691, %v1645
    %v1702 = vsel %vm449, %v1692, %v1647
    %v1703 = vsel %vm449, %v1693, %v1649
    %v1704 = vsel %vm449, %v1694, %v1651
    %v1705 = vsel %vm449, %v1695, %v1653
    %v1706 = vld [vmem:[%s4] sm:$0xf]
    %v1707 = vld [vmem:[%s4 + $0x4] sm:$0xf]
    %v1708 = vld [vmem:[%s4 + $0x8] sm:$0xf]
    %v1709 = vld [vmem:[%s4 + $0xc] sm:$0xf]
    %v1710 = vld [vmem:[%s4 + $0x10] sm:$0xf]
    %v1711 = vld [vmem:[%s4 + $0x14] sm:$0xf]
    %v1712 = vld [vmem:[%s4 + $0x18] sm:$0xf]
    %v1713 = vld [vmem:[%s4 + $0x1c] sm:$0xf]
    %v1714 = vld [vmem:[%s4 + $0x20] sm:$0xf]
    %v1715 = vld [vmem:[%s4 + $0x24] sm:$0xf]
    %v1716 = vunpack.c.l.bf16 %v1706
    %v1717 = vunpack.c.l.bf16 %v1707
    %v1718 = vunpack.c.l.bf16 %v1708
    %v1719 = vunpack.c.l.bf16 %v1709
    %v1720 = vunpack.c.l.bf16 %v1710
    %v1721 = vunpack.c.l.bf16 %v1711
    %v1722 = vunpack.c.l.bf16 %v1712
    %v1723 = vunpack.c.l.bf16 %v1713
    %v1724 = vunpack.c.l.bf16 %v1714
    %v1725 = vunpack.c.l.bf16 %v1715
    %v1726 = vmul.f32 %v1696, %v1716
    %v1727 = vmul.f32 %v1697, %v1717
    %v1728 = vmul.f32 %v1698, %v1718
    %v1729 = vmul.f32 %v1699, %v1719
    %v1730 = vmul.f32 %v1700, %v1720
    %v1731 = vmul.f32 %v1701, %v1721
    %v1732 = vmul.f32 %v1702, %v1722
    %v1733 = vmul.f32 %v1703, %v1723
    %v1734 = vmul.f32 %v1704, %v1724
    %v1735 = vmul.f32 %v1705, %v1725
    %v1736 = vld [vmem:[%s16] sm:$0xf]
    %v1737 = vld [vmem:[%s16 + $0x4] sm:$0xf]
    %v1738 = vld [vmem:[%s16 + $0x8] sm:$0xf]
    %v1739 = vld [vmem:[%s16 + $0xc] sm:$0xf]
    %v1740 = vld [vmem:[%s16 + $0x10] sm:$0xf]
    %v1741 = vpack.c.bf16 %v1727, %v1726
    %v1742 = vpack.c.bf16 %v1729, %v1728
    %v1743 = vpack.c.bf16 %v1731, %v1730
    %v1744 = vpack.c.bf16 %v1733, %v1732
    %v1745 = vpack.c.bf16 %v1735, %v1734
    %v1751 = vunpack.c.l.b16 %v1736
    %v1752 = vunpack.c.l.b16 %v1737
    %v1753 = vunpack.c.l.b16 %v1738
    %v1754 = vunpack.c.l.b16 %v1739
    %v1755 = vunpack.c.l.b16 %v1740
    %v1756 = vpack.c.b16 %v1752, %v1751
    %v1757 = vpack.c.b16 %v1754, %v1753
    %v1758 = vpack.c.b16 %v1755, %v1755
    %vm1761 = vcmask 326656
    %v1763 = vsel %vm1761, %v1741, 0
    %v1766 = vsel %vm1761, %v1742, 0
    %v1769 = vsel %vm1761, %v1743, 0
    %v1772 = vsel %vm1761, %v1744, 0
    %v1775 = vsel %vm1761, %v1745, 0
    %v1778 = vsel %vm339, %v1758, 0
    %1780 = vmatprep.subr.bf16.mxu0 0
    %1781 = vmatpush1.bf16.msra.mxu0 0
    %1782 = vmatprep.subr.bf16.mxu0 0
    %1783 = vmatpush1.bf16.msra.mxu0 0
    %1784 = vmatprep.subr.bf16.mxu0 0
    %1785 = vmatpush1.bf16.msra.mxu0 0
    %1786 = vmatprep.subr.bf16.mxu0 0
    %1787 = vmatpush1.bf16.msra.mxu0 0
    %1788 = vmatprep.subr.bf16.mxu0 0
    %1789 = vmatpush1.bf16.msra.mxu0 0
    %1790 = vmatprep.subr.bf16.mxu0 0
    %1791 = vmatpush1.bf16.msra.mxu0 %v1778
    %1792 = vmatprep.subr.bf16.mxu0 0
    %1793 = vmatpush1.bf16.msra.mxu0 %v1757
    %1794 = vmatprep.subr.bf16.mxu0 0
    %1795 = vmatpush1.bf16.msra.mxu0 %v1756
    %1796 = vmatprep.subr.bf16.mxu0 0
    %1797 = vmatpush2.bf16.msra.mxu0 0
    %1798 = vmatprep.subr.bf16.mxu0 0
    %1799 = vmatpush2.bf16.msra.mxu0 0
    %1800 = vmatprep.subr.bf16.mxu0 0
    %1801 = vmatpush2.bf16.msra.mxu0 0
    %1802 = vmatprep.subr.bf16.mxu0 0
    %1803 = vmatpush2.bf16.msra.mxu0 0
    %1804 = vmatprep.subr.bf16.mxu0 0
    %1805 = vmatpush2.bf16.msra.mxu0 0
    %1806 = vmatprep.subr.bf16.mxu0 0
    %1807 = vmatpush2.bf16.msra.mxu0 0
    %1808 = vmatprep.subr.bf16.mxu0 0
    %1809 = vmatpush2.bf16.msra.mxu0 0
    %1810 = vmatprep.subr.bf16.mxu0 0
    %1811 = vmatpush2.bf16.msra.mxu0 0
    %1812 = vmatprep.mubr.bf16.mxu0 0
    %1813 = vmatmul.mubr.bf16.gmra.mxu0 %v1763
    %v1814 = vpop.f32.mrf.mxu0
    %v1815 = vadd.f32 0.0, %v1814
    %v1816 = vpop.f32.mrf.mxu0
    %v1817 = vpop.f32.mrf.mxu0
    %v1818 = vadd.f32 0.0, %v1817
    %v1819 = vpop.f32.mrf.mxu0
    %1820 = vmatprep.mubr.bf16.mxu0 0
    %1821 = vmatmul.mubr.bf16.gmra.mxu0 %v1766
    %v1822 = vpop.f32.mrf.mxu0
    %v1823 = vadd.f32 0.0, %v1822
    %v1824 = vpop.f32.mrf.mxu0
    %v1825 = vpop.f32.mrf.mxu0
    %v1826 = vadd.f32 0.0, %v1825
    %v1827 = vpop.f32.mrf.mxu0
    %1828 = vmatprep.mubr.bf16.mxu0 0
    %1829 = vmatmul.mubr.bf16.gmra.mxu0 %v1769
    %v1830 = vpop.f32.mrf.mxu0
    %v1831 = vadd.f32 0.0, %v1830
    %v1832 = vpop.f32.mrf.mxu0
    %v1833 = vpop.f32.mrf.mxu0
    %v1834 = vadd.f32 0.0, %v1833
    %v1835 = vpop.f32.mrf.mxu0
    %1836 = vmatprep.mubr.bf16.mxu0 0
    %1837 = vmatmul.mubr.bf16.gmra.mxu0 %v1772
    %v1838 = vpop.f32.mrf.mxu0
    %v1839 = vadd.f32 0.0, %v1838
    %v1840 = vpop.f32.mrf.mxu0
    %v1841 = vpop.f32.mrf.mxu0
    %v1842 = vadd.f32 0.0, %v1841
    %v1843 = vpop.f32.mrf.mxu0
    %1844 = vmatprep.mubr.bf16.mxu0 0
    %1845 = vmatmul.mubr.bf16.gmra.mxu0 %v1775
    %v1846 = vpop.f32.mrf.mxu0
    %v1847 = vadd.f32 0.0, %v1846
    %v1848 = vpop.f32.mrf.mxu0
    %v1849 = vpop.f32.mrf.mxu0
    %v1850 = vadd.f32 0.0, %v1849
    %v1851 = vpop.f32.mrf.mxu0
    %1852 = vdwg.mxu0
    %1863 = vrot.lane.b32.xlu0 %v1524, 2
    %v1864 = vpop.permute.xlu0 %1863
    %1865 = vrot.lane.b32.xlu0 %v1525, 2
    %v1866 = vpop.permute.xlu0 %1865
    %1867 = vrot.lane.b32.xlu0 %v1526, 2
    %v1868 = vpop.permute.xlu0 %1867
    %1869 = vrot.lane.b32.xlu0 %v1527, 2
    %v1870 = vpop.permute.xlu0 %1869
    %1871 = vrot.lane.b32.xlu0 %v1528, 2
    %v1872 = vpop.permute.xlu0 %1871
    %1873 = vrot.lane.b32.xlu0 %v1529, 2
    %v1874 = vpop.permute.xlu0 %1873
    %1875 = vrot.lane.b32.xlu0 %v1530, 2
    %v1876 = vpop.permute.xlu0 %1875
    %1877 = vrot.lane.b32.xlu0 %v1531, 2
    %v1878 = vpop.permute.xlu0 %1877
    %1879 = vrot.lane.b32.xlu0 %v1532, 2
    %v1880 = vpop.permute.xlu0 %1879
    %1881 = vrot.lane.b32.xlu0 %v1533, 2
    %v1882 = vpop.permute.xlu0 %1881
    %1893 = vrot.lane.b32.xlu0 %v1524, 4
    %v1894 = vpop.permute.xlu0 %1893
    %1895 = vrot.lane.b32.xlu0 %v1525, 4
    %v1896 = vpop.permute.xlu0 %1895
    %1897 = vrot.lane.b32.xlu0 %v1526, 4
    %v1898 = vpop.permute.xlu0 %1897
    %1899 = vrot.lane.b32.xlu0 %v1527, 4
    %v1900 = vpop.permute.xlu0 %1899
    %1901 = vrot.lane.b32.xlu0 %v1528, 4
    %v1902 = vpop.permute.xlu0 %1901
    %1903 = vrot.lane.b32.xlu0 %v1529, 4
    %v1904 = vpop.permute.xlu0 %1903
    %1905 = vrot.lane.b32.xlu0 %v1530, 4
    %v1906 = vpop.permute.xlu0 %1905
    %1907 = vrot.lane.b32.xlu0 %v1531, 4
    %v1908 = vpop.permute.xlu0 %1907
    %1909 = vrot.lane.b32.xlu0 %v1532, 4
    %v1910 = vpop.permute.xlu0 %1909
    %1911 = vrot.lane.b32.xlu0 %v1533, 4
    %v1912 = vpop.permute.xlu0 %1911
    %1923 = vrot.lane.b32.xlu0 %v1524, 6
    %v1924 = vpop.permute.xlu0 %1923
    %1925 = vrot.lane.b32.xlu0 %v1525, 6
    %v1926 = vpop.permute.xlu0 %1925
    %1927 = vrot.lane.b32.xlu0 %v1526, 6
    %v1928 = vpop.permute.xlu0 %1927
    %1929 = vrot.lane.b32.xlu0 %v1527, 6
    %v1930 = vpop.permute.xlu0 %1929
    %1931 = vrot.lane.b32.xlu0 %v1528, 6
    %v1932 = vpop.permute.xlu0 %1931
    %1933 = vrot.lane.b32.xlu0 %v1529, 6
    %v1934 = vpop.permute.xlu0 %1933
    %1935 = vrot.lane.b32.xlu0 %v1530, 6
    %v1936 = vpop.permute.xlu0 %1935
    %1937 = vrot.lane.b32.xlu0 %v1531, 6
    %v1938 = vpop.permute.xlu0 %1937
    %1939 = vrot.lane.b32.xlu0 %v1532, 6
    %v1940 = vpop.permute.xlu0 %1939
    %1941 = vrot.lane.b32.xlu0 %v1533, 6
    %v1942 = vpop.permute.xlu0 %1941
    %1953 = vrot.lane.b32.xlu0 %v1524, 8
    %v1954 = vpop.permute.xlu0 %1953
    %1955 = vrot.lane.b32.xlu0 %v1525, 8
    %v1956 = vpop.permute.xlu0 %1955
    %1957 = vrot.lane.b32.xlu0 %v1526, 8
    %v1958 = vpop.permute.xlu0 %1957
    %1959 = vrot.lane.b32.xlu0 %v1527, 8
    %v1960 = vpop.permute.xlu0 %1959
    %1961 = vrot.lane.b32.xlu0 %v1528, 8
    %v1962 = vpop.permute.xlu0 %1961
    %1963 = vrot.lane.b32.xlu0 %v1529, 8
    %v1964 = vpop.permute.xlu0 %1963
    %1965 = vrot.lane.b32.xlu0 %v1530, 8
    %v1966 = vpop.permute.xlu0 %1965
    %1967 = vrot.lane.b32.xlu0 %v1531, 8
    %v1968 = vpop.permute.xlu0 %1967
    %1969 = vrot.lane.b32.xlu0 %v1532, 8
    %v1970 = vpop.permute.xlu0 %1969
    %1971 = vrot.lane.b32.xlu0 %v1533, 8
    %v1972 = vpop.permute.xlu0 %1971
    %v1983 = vsel %vm1392, %v1524, %v1864
    %v1984 = vsel %vm1392, %v1525, %v1866
    %v1985 = vsel %vm1392, %v1526, %v1868
    %v1986 = vsel %vm1392, %v1527, %v1870
    %v1987 = vsel %vm1392, %v1528, %v1872
    %v1988 = vsel %vm1392, %v1529, %v1874
    %v1989 = vsel %vm1392, %v1530, %v1876
    %v1990 = vsel %vm1392, %v1531, %v1878
    %v1991 = vsel %vm1392, %v1532, %v1880
    %v1992 = vsel %vm1392, %v1533, %v1882
    %vm1993 = vcmask 31744
    %v1994 = vsel %vm1993, %v1983, %v1894
    %v1995 = vsel %vm1993, %v1984, %v1896
    %v1996 = vsel %vm1993, %v1985, %v1898
    %v1997 = vsel %vm1993, %v1986, %v1900
    %v1998 = vsel %vm1993, %v1987, %v1902
    %v1999 = vsel %vm1993, %v1988, %v1904
    %v2000 = vsel %vm1993, %v1989, %v1906
    %v2001 = vsel %vm1993, %v1990, %v1908
    %v2002 = vsel %vm1993, %v1991, %v1910
    %v2003 = vsel %vm1993, %v1992, %v1912
    %vm2004 = vcmask 48128
    %v2005 = vsel %vm2004, %v1994, %v1924
    %v2006 = vsel %vm2004, %v1995, %v1926
    %v2007 = vsel %vm2004, %v1996, %v1928
    %v2008 = vsel %vm2004, %v1997, %v1930
    %v2009 = vsel %vm2004, %v1998, %v1932
    %v2010 = vsel %vm2004, %v1999, %v1934
    %v2011 = vsel %vm2004, %v2000, %v1936
    %v2012 = vsel %vm2004, %v2001, %v1938
    %v2013 = vsel %vm2004, %v2002, %v1940
    %v2014 = vsel %vm2004, %v2003, %v1942
    %v2015 = vsel %vm1011, %v2005, %v1954
    %v2016 = vsel %vm1011, %v2006, %v1956
    %v2017 = vsel %vm1011, %v2007, %v1958
    %v2018 = vsel %vm1011, %v2008, %v1960
    %v2019 = vsel %vm1011, %v2009, %v1962
    %v2020 = vsel %vm1011, %v2010, %v1964
    %v2021 = vsel %vm1011, %v2011, %v1966
    %v2022 = vsel %vm1011, %v2012, %v1968
    %v2023 = vsel %vm1011, %v2013, %v1970
    %v2024 = vsel %vm1011, %v2014, %v1972
    %v2025 = vadd.f32 %v2015, %v1815
    %v2026 = vadd.f32 %v2016, %v1818
    %v2027 = vadd.f32 %v2017, %v1823
    %v2028 = vadd.f32 %v2018, %v1826
    %v2029 = vadd.f32 %v2019, %v1831
    %v2030 = vadd.f32 %v2020, %v1834
    %v2031 = vadd.f32 %v2021, %v1839
    %v2032 = vadd.f32 %v2022, %v1842
    %v2033 = vadd.f32 %v2023, %v1847
    %v2034 = vadd.f32 %v2024, %v1850
    %v2035 = vmul.f32 %v2025, %v104
    %v2036 = vmul.f32 %v2026, %v105
    %v2037 = vmul.f32 %v2027, %v106
    %v2038 = vmul.f32 %v2028, %v107
    %v2039 = vmul.f32 %v2029, %v108
    %v2040 = vmul.f32 %v2030, %v109
    %v2041 = vmul.f32 %v2031, %v110
    %v2042 = vmul.f32 %v2032, %v111
    %v2043 = vmul.f32 %v2033, %v112
    %v2044 = vmul.f32 %v2034, %v113
    %v2045 = vmul.f32 %v2035, %v2035
    %v2046 = vmul.f32 %v2036, %v2036
    %v2047 = vmul.f32 %v2037, %v2037
    %v2048 = vmul.f32 %v2038, %v2038
    %v2049 = vmul.f32 %v2039, %v2039
    %v2050 = vmul.f32 %v2040, %v2040
    %v2051 = vmul.f32 %v2041, %v2041
    %v2052 = vmul.f32 %v2042, %v2042
    %v2053 = vmul.f32 %v2043, %v2043
    %v2054 = vmul.f32 %v2044, %v2044
    %vm2055 = vcmask 80896
    %v2056 = vsel %vm2055, %v2045, 0.0
    %v2057 = vsel %vm2055, %v2046, 0.0
    %v2058 = vadd.f32 %v2056, %v2057
    %v2059 = vsel %vm2055, %v2047, 0.0
    %v2060 = vadd.f32 %v2058, %v2059
    %v2061 = vsel %vm2055, %v2048, 0.0
    %v2062 = vadd.f32 %v2060, %v2061
    %v2063 = vsel %vm2055, %v2049, 0.0
    %v2064 = vadd.f32 %v2062, %v2063
    %v2065 = vsel %vm2055, %v2050, 0.0
    %v2066 = vadd.f32 %v2064, %v2065
    %v2067 = vsel %vm2055, %v2051, 0.0
    %v2068 = vadd.f32 %v2066, %v2067
    %v2069 = vsel %vm2055, %v2052, 0.0
    %v2070 = vadd.f32 %v2068, %v2069
    %v2071 = vsel %vm2055, %v2053, 0.0
    %v2072 = vadd.f32 %v2070, %v2071
    %v2073 = vsel %vm2055, %v2054, 0.0
    %v2074 = vadd.f32 %v2072, %v2073
    %2075 = vadd.xlane.f32.xlu0 %v2074
    %v2076 = vpop.xlane.xlu0 %2075
    %v2077 = vrot.slane %v2076, 4
    %v2078 = vadd.f32 %v2076, %v2077
    %v2079 = vrot.slane %v2078, 2
    %v2080 = vadd.f32 %v2078, %v2079
    %v2081 = vrot.slane %v2080, 1
    %v2082 = vadd.f32 %v2080, %v2081
    %s2083 = vtos %v2082
    %v2084 = vlaneseq
    %v2085 = vand.u32 %v2084, 127
    %vm2086 = vcmp.eq.s32.totalorder %v63, 0
    %vm2087 = vcmp.eq.s32.totalorder %v2085, 0
    %vm2088 = vmand %vm2086, %vm2087
    %vm2089 = vcmp.eq.s32.totalorder %v2085, 1
    %vm2090 = vmand %vm2086, %vm2089
    %vm2091 = vcmp.eq.s32.totalorder %v2085, 2
    %vm2092 = vmand %vm2086, %vm2091
    %v2093 = vstv %s2083
    %v2094 = vsel %vm2092, %v2093, 0.0
    %v2095 = vstv %s1420
    %v2096 = vsel %vm2090, %v2095, %v2094
    %v2097 = vstv %s1039
    %v2098 = vsel %vm2088, %v2097, %v2096
    %2099 = vst [vmem:[#allocation2] sm:$0xff] %v2098
    // Predicated region
    $region74: #{tpu_custom_call.1} parent=1 // pred_check
      _
    $region75: #{tpu_custom_call.1} parent=1 // pred_check_branch
      %2101 = sbr.rel (0) target = $region77
    $region76: #{tpu_custom_call.1} parent=1 // pred_region
      %s2103 = ssub.s32 128, 128
      %2104 = vsyncadd [#allocation3], %s2103
      %s2106 = sshll.u32 [#allocation2], 4
      %s2107 = int_to_ptr.vmem [resolvable:$true] %s2106
      %2109 = dma.vmem_to_hbm [thread:$0]  %s2107, 128, %s18, [#allocation3]
    $region77: #{tpu_custom_call.1} parent=1 // pred_fallthru
      _
    // Predicated region
    $region78: #{tpu_custom_call.1} parent=1 // pred_check
      _
    $region79: #{tpu_custom_call.1} parent=1 // pred_check_branch
      %2111 = sbr.rel (0) target = $region81
    $region80: #{tpu_custom_call.1} parent=1 // pred_region
      %2112 = dma.done [#allocation3], 128
    $region81: #{tpu_custom_call.1} parent=1 // pred_fallthru
      _
    %2113 = vsyncpa [#allocation3], 1

</llo_original>
